<compile_context>
chip_gen: v7x
topology: tpu7x:2x2x1
jax: 0.10.0
libtpu: 0.0.40
codegen_flags: <defaults>
</compile_context>

<pallas_src>
import functools

import jax
import jax.numpy as jnp
from jax.experimental import pallas as pl
from jax.experimental.pallas import tpu as pltpu

BN_EPS = 1e-5
LANE = 128


def _round_up(v, m):
    return ((v + m - 1) // m) * m


def _pad_to(a, shape):
    return jnp.pad(a, [(0, s - d) for d, s in zip(a.shape, shape)])


def _fused_mlp_kernel(x_ref, w0_ref, b0_ref, wmid_ref, bmid_ref,
                      wlast_ref, blast_ref, gamma_ref, beta_ref,
                      o_ref,
                      act_ref, sum_ref, sumsq_ref,
                      wfmid_ref, bfmid_ref, wflast_ref, bflast_ref,
                      *, num_layers, n_rows, n_pad, tile_m, hidden_pad):
    """Grid point (l, t): apply layer `l` to batch tile `t`.

    Layer l (l > 0) consumes BatchNorm(previous layer's ReLU output); the BN of
    layer l-1 was measured during layer l-1's sweep over all batch tiles and is
    folded into layer l's weights/bias once, at the t == 0 prologue.
    """
    l = pl.program_id(0)
    t = pl.program_id(1)
    last = num_layers - 1
    inv_n = 1.0 / float(n_rows)

    # ----------------- per-layer prologue (first batch tile only) -----------
    @pl.when(t == 0)
    def _prologue():
        @pl.when(l > 0)
        def _fold_bn_into_weights():
            # Full-batch statistics of the previous hidden layer's ReLU output.
            mean = sum_ref[...] * inv_n
            var = jnp.maximum(sumsq_ref[...] * inv_n - mean * mean, 0.0)
            inv_std = jax.lax.rsqrt(var + BN_EPS)
            scale = gamma_ref[l - 1] * inv_std               # (1, H) f32
            shift = beta_ref[l - 1] - mean * scale           # (1, H) f32
            # bn(a) @ W + b  ==  a @ (diag(scale) @ W) + (shift @ W + b)
            rows = jax.lax.broadcasted_iota(jnp.int32, (hidden_pad, hidden_pad), 0)
            cols = jax.lax.broadcasted_iota(jnp.int32, (hidden_pad, hidden_pad), 1)
            diag = jnp.where(rows == cols,
                             jnp.broadcast_to(scale, (hidden_pad, hidden_pad)),
                             0.0)
            shift8 = jnp.broadcast_to(shift, (8, hidden_pad))  # sublane-friendly

            @pl.when(l < last)
            def _fold_mid():
                w = wmid_ref[l - 1].astype(jnp.float32)        # (H, H)
                wfmid_ref[...] = jnp.dot(
                    diag, w, preferred_element_type=jnp.float32).astype(jnp.bfloat16)
                bfmid_ref[...] = bmid_ref[l - 1] + jnp.dot(
                    shift8, w, preferred_element_type=jnp.float32)[0:1, :]

            @pl.when(l == last)
            def _fold_last():
                w = wlast_ref[...].astype(jnp.float32)         # (H, out_pad)
                wflast_ref[...] = jnp.dot(
                    diag, w, preferred_element_type=jnp.float32).astype(jnp.bfloat16)
                bflast_ref[...] = blast_ref[...] + jnp.dot(
                    shift8, w, preferred_element_type=jnp.float32)[0:1, :]

        # Reset the statistics accumulators for this (hidden) layer's outputs.
        @pl.when(l < last)
        def _reset_stats():
            sum_ref[...] = jnp.zeros_like(sum_ref)
            sumsq_ref[...] = jnp.zeros_like(sumsq_ref)

    # --------------------------- per-tile compute ----------------------------
    row0 = pl.multiple_of(t * tile_m, tile_m)

    def _store_act_and_stats(hr):
        # hr: (tile_m, hidden_pad) f32, post-ReLU / pre-BN activations.
        act_ref[pl.ds(row0, tile_m), :] = hr.astype(jnp.bfloat16)
        if n_pad != n_rows:  # static: only emit masking when batch padding exists
            rid = row0 + jax.lax.broadcasted_iota(jnp.int32, hr.shape, 0)
            hr = jnp.where(rid < n_rows, hr, 0.0)   # padded rows out of the stats
        sum_ref[...] += jnp.sum(hr, axis=0, keepdims=True)
        sumsq_ref[...] += jnp.sum(hr * hr, axis=0, keepdims=True)

    @pl.when(l == 0)
    def _first_layer():
        h = jnp.dot(x_ref[...], w0_ref[...], preferred_element_type=jnp.float32)
        _store_act_and_stats(jnp.maximum(h + b0_ref[...], 0.0))
        # TODO(synk): dropout with p > 0 (training) not implemented (default
        # p = 0.0 -> no-op); BN running_mean/var buffers are not updated.

    if num_layers > 2:
        @pl.when(jnp.logical_and(l > 0, l < last))
        def _hidden_layer():
            a = act_ref[pl.ds(row0, tile_m), :]               # bf16, BN in W'/b'
            h = jnp.dot(a, wfmid_ref[...], preferred_element_type=jnp.float32)
            _store_act_and_stats(jnp.maximum(h + bfmid_ref[...], 0.0))

    @pl.when(l == last)
    def _final_layer():
        a = act_ref[pl.ds(row0, tile_m), :]
        h = jnp.dot(a, wflast_ref[...], preferred_element_type=jnp.float32)
        o_ref[...] = (h + bflast_ref[...]).astype(o_ref.dtype)


def pack_params(params, c_in_pad, hidden_pad, out_pad):
    """Per-dimension zero-padding; weights bf16 (MXU), biases/BN params f32."""
    num_layers = len(params)
    w0 = _pad_to(params[0][0], (c_in_pad, hidden_pad)).astype(jnp.bfloat16)
    b0 = _pad_to(params[0][1], (1, hidden_pad)).astype(jnp.float32)
    w_last = _pad_to(params[-1][0], (hidden_pad, out_pad)).astype(jnp.bfloat16)
    b_last = _pad_to(params[-1][1], (1, out_pad)).astype(jnp.float32)
    if num_layers > 2:
        w_mid = jnp.stack([_pad_to(p[0], (hidden_pad, hidden_pad))
                           for p in params[1:-1]]).astype(jnp.bfloat16)
        b_mid = jnp.stack([_pad_to(p[1], (1, hidden_pad))
                           for p in params[1:-1]]).astype(jnp.float32)
    else:  # dummy, never read; keeps the kernel signature uniform
        w_mid = jnp.zeros((1, hidden_pad, hidden_pad), jnp.bfloat16)
        b_mid = jnp.zeros((1, 1, hidden_pad), jnp.float32)
    gamma = jnp.stack([_pad_to(p[2], (1, hidden_pad))
                       for p in params[:-1]]).astype(jnp.float32)
    beta = jnp.stack([_pad_to(p[3], (1, hidden_pad))
                      for p in params[:-1]]).astype(jnp.float32)
    return w0, b0, w_mid, b_mid, w_last, b_last, gamma, beta


def mlp_forward(params, x, *, tile_m=256):
    n, c_in = x.shape
    num_layers = len(params)
    assert num_layers >= 2
    hidden = params[0][0].shape[1]
    out_c = params[-1][0].shape[1]

    # Lane-dense, per-dimension padding.  (Prefer model dims that are multiples
    # of 256 to fully fill the v6e/v7x 256x256 MXU.)
    c_in_pad = _round_up(c_in, LANE)
    hidden_pad = _round_up(hidden, LANE)
    out_pad = _round_up(out_c, LANE)

    # Batch tiling: pad n up to a tile multiple; padded rows are masked out of
    # the BN statistics in-kernel.  tile_m multiple of 16 (bf16 sublane packing).
    tile_m = _round_up(min(tile_m, max(n, 16)), 16)
    n_pad = _round_up(n, tile_m)
    num_tiles = n_pad // tile_m
    last_tile = num_tiles - 1

    w0, b0, w_mid, b_mid, w_last, b_last, gamma, beta = pack_params(
        params, c_in_pad, hidden_pad, out_pad)
    x_pad = _pad_to(x.astype(jnp.bfloat16), (n_pad, c_in_pad))   # bf16 input, read once

    # x only advances at layer 0, then parks on the last-fetched tile (no refetch).
    x_map = lambda l, t: (jnp.where(l == 0, t, last_tile), 0)
    # Output block index only advances during the final layer (no per-layer writeback).
    out_map = lambda l, t: (jnp.where(l == num_layers - 1, t, 0), 0)
    const2 = lambda l, t: (0, 0)
    const3 = lambda l, t: (0, 0, 0)

    # Explicit VMEM budget (act scratch + double-buffered params/tiles + fold
    # scratch + temporaries) with headroom.
    p_bytes = sum(int(a.size) * a.dtype.itemsize
                  for a in (w0, b0, w_mid, b_mid, w_last, b_last, gamma, beta))
    vmem_needed = (
        n_pad * hidden_pad * 2                              # bf16 activation scratch
        + 2 * p_bytes                                       # double-buffered params
        + 2 * tile_m * (c_in_pad * 2 + out_pad * 4)         # in/out tiles (x2 buffers)
        + hidden_pad * (hidden_pad + out_pad) * 2           # folded-weight scratch
        + 2 * hidden_pad * hidden_pad * 4                   # fold temporaries
        + 32 * (hidden_pad + out_pad) * 4)                  # small vectors + slack
    vmem_limit = min(int(vmem_needed * 1.5) + (16 << 20), 100 << 20)

    kernel = functools.partial(
        _fused_mlp_kernel, num_layers=num_layers, n_rows=n, n_pad=n_pad,
        tile_m=tile_m, hidden_pad=hidden_pad)

    out = pl.pallas_call(
        kernel,
        out_shape=jax.ShapeDtypeStruct((n_pad, out_pad), jnp.float32),
        grid_spec=pltpu.PrefetchScalarGridSpec(
            num_scalar_prefetch=0,
            grid=(num_layers, num_tiles),
            in_specs=[
                pl.BlockSpec((tile_m, c_in_pad), x_map),
                # Parameters: constant block index -> DMA'd once, VMEM-resident.
                # (pl.Buffered(1) would drop their unused second buffer; default
                #  double-buffering is kept and accounted for in vmem_limit.)
                pl.BlockSpec((c_in_pad, hidden_pad), const2),
                pl.BlockSpec((1, hidden_pad), const2),
                pl.BlockSpec(w_mid.shape, const3),
                pl.BlockSpec(b_mid.shape, const3),
                pl.BlockSpec((hidden_pad, out_pad), const2),
                pl.BlockSpec((1, out_pad), const2),
                pl.BlockSpec(gamma.shape, const3),
                pl.BlockSpec(beta.shape, const3),
            ],
            out_specs=pl.BlockSpec((tile_m, out_pad), out_map),
            scratch_shapes=[
                pltpu.VMEM((n_pad, hidden_pad), jnp.bfloat16),       # hidden acts (whole batch)
                pltpu.VMEM((1, hidden_pad), jnp.float32),            # per-channel sum
                pltpu.VMEM((1, hidden_pad), jnp.float32),            # per-channel sum of squares
                pltpu.VMEM((hidden_pad, hidden_pad), jnp.bfloat16),  # BN-folded mid weight
                pltpu.VMEM((1, hidden_pad), jnp.float32),            # BN-folded mid bias
                pltpu.VMEM((hidden_pad, out_pad), jnp.bfloat16),     # BN-folded last weight
                pltpu.VMEM((1, out_pad), jnp.float32),               # BN-folded last bias
            ]),
        compiler_params=pltpu.CompilerParams(
            # Both axes sequential: layers chain and the BN statistics create a
            # cross-batch-tile dependency.
            dimension_semantics=("arbitrary", "arbitrary"),
            vmem_limit_bytes=vmem_limit),
    )(x_pad, w0, b0, w_mid, b_mid, w_last, b_last, gamma, beta)

    return out[:n, :out_c]


def init_mlp_params(key, in_channels, hidden_channels, out_channels, num_layers):
    """Deterministic synthetic parameters (shapes match the PyTorch module)."""
    dims = [in_channels] + [hidden_channels] * (num_layers - 1) + [out_channels]
    params = []
    for li in range(num_layers):
        key, kw, kb, kg, kbe = jax.random.split(key, 5)
        c_in, c_out = dims[li], dims[li + 1]
        w = jax.random.normal(kw, (c_in, c_out), jnp.float32) * 0.1
        b = jax.random.normal(kb, (1, c_out), jnp.float32) * 0.1
        if li < num_layers - 1:
            gamma = 1.0 + 0.1 * jax.random.normal(kg, (1, c_out), jnp.float32)
            beta = 0.1 * jax.random.normal(kbe, (1, c_out), jnp.float32)
            params.append((w, b, gamma, beta))
        else:
            params.append((w, b))
    return params


def ref_forward(params, x):
    """Plain-JAX reference, same MXU precision (bf16 operands, f32 accumulate)."""
    def mm(a, w):
        return jnp.dot(a.astype(jnp.bfloat16), w.astype(jnp.bfloat16),
                       preferred_element_type=jnp.float32)
    h = x
    for (w, b, gamma, beta) in params[:-1]:
        h = jnp.maximum(mm(h, w) + b, 0.0)
        mean = h.mean(axis=0, keepdims=True)
        var = ((h - mean) ** 2).mean(axis=0, keepdims=True)   # biased, like BN
        h = (h - mean) / jnp.sqrt(var + BN_EPS) * gamma + beta
    w, b = params[-1]
    return mm(h, w) + b


if __name__ == "__main__":
    key = jax.random.PRNGKey(0)
    kx, kp = jax.random.split(key)

    batch = 600                 # 3 batch tiles of 256; last tile partially padded
                                # -> exercises cross-tile BN + padded-row masking
    in_channels, hidden_channels, out_channels = 32, 64, 8
    num_layers = 3

    x = jax.random.normal(kx, (batch, in_channels), jnp.float32)
    params = init_mlp_params(kp, in_channels, hidden_channels, out_channels,
                             num_layers)

    fwd = jax.jit(functools.partial(mlp_forward, tile_m=256))
    out = fwd(params, x)
    jax.block_until_ready(out)
    assert out.shape == (batch, out_channels), out.shape

    # Reference check (bf16 matmul operands mirror the kernel's MXU precision;
    # tolerance covers the bf16 activation stash + BN-folded bf16 weights).
    ref = ref_forward(params, x)
    max_err = float(jnp.max(jnp.abs(out - ref)))
    assert jnp.allclose(out, ref, atol=3e-2, rtol=3e-2), max_err

    print("KERNEL_OK")
</pallas_src>

<mosaic_0001>
module attributes {stable_mosaic.version = 11 : i64} {
  func.func @_fused_mlp_kernel(%arg0: i32, %arg1: i32, %arg2: memref<256x128xbf16, #tpu.memory_space<vmem>>, %arg3: memref<128x128xbf16, #tpu.memory_space<vmem>>, %arg4: memref<1x128xf32, #tpu.memory_space<vmem>>, %arg5: memref<1x128x128xbf16, #tpu.memory_space<vmem>>, %arg6: memref<1x1x128xf32, #tpu.memory_space<vmem>>, %arg7: memref<128x128xbf16, #tpu.memory_space<vmem>>, %arg8: memref<1x128xf32, #tpu.memory_space<vmem>>, %arg9: memref<2x1x128xf32, #tpu.memory_space<vmem>>, %arg10: memref<2x1x128xf32, #tpu.memory_space<vmem>>, %arg11: memref<256x128xf32, #tpu.memory_space<vmem>>, %arg12: memref<768x128xbf16, #tpu.memory_space<vmem>>, %arg13: memref<1x128xf32, #tpu.memory_space<vmem>>, %arg14: memref<1x128xf32, #tpu.memory_space<vmem>>, %arg15: memref<128x128xbf16, #tpu.memory_space<vmem>>, %arg16: memref<1x128xf32, #tpu.memory_space<vmem>>, %arg17: memref<128x128xbf16, #tpu.memory_space<vmem>>, %arg18: memref<1x128xf32, #tpu.memory_space<vmem>>) attributes {dimension_semantics = [#tpu.dimension_semantics<arbitrary>, #tpu.dimension_semantics<arbitrary>], iteration_bounds = array<i64: 3, 3>, scalar_prefetch = 0 : i64, scratch_operands = 7 : i64, tpu.core_type = #tpu.core_type<tc>, window_params = [{transform_indices = @transform_0, window_bounds = array<i64: 256, 128>}, {pipeline_mode = #tpu.pipeline_mode<synchronous>, transform_indices = @transform_1, window_bounds = array<i64: 128, 128>}, {pipeline_mode = #tpu.pipeline_mode<synchronous>, transform_indices = @transform_2, window_bounds = array<i64: 1, 128>}, {pipeline_mode = #tpu.pipeline_mode<synchronous>, transform_indices = @transform_3, window_bounds = array<i64: 1, 128, 128>}, {pipeline_mode = #tpu.pipeline_mode<synchronous>, transform_indices = @transform_4, window_bounds = array<i64: 1, 1, 128>}, {pipeline_mode = #tpu.pipeline_mode<synchronous>, transform_indices = @transform_5, window_bounds = array<i64: 128, 128>}, {pipeline_mode = #tpu.pipeline_mode<synchronous>, transform_indices = @transform_6, window_bounds = array<i64: 1, 128>}, {pipeline_mode = #tpu.pipeline_mode<synchronous>, transform_indices = @transform_7, window_bounds = array<i64: 2, 1, 128>}, {pipeline_mode = #tpu.pipeline_mode<synchronous>, transform_indices = @transform_8, window_bounds = array<i64: 2, 1, 128>}, {transform_indices = @transform_9, window_bounds = array<i64: 256, 128>}]} {
    %c0_i32 = arith.constant 0 : i32
    %0 = arith.cmpi eq, %arg1, %c0_i32 : i32
    %1 = arith.extui %0 : i1 to i32
    %c0_i32_0 = arith.constant 0 : i32
    %2 = arith.cmpi ne, %1, %c0_i32_0 : i32
    scf.if %2 {
      %c0_i32_7 = arith.constant 0 : i32
      %16 = arith.cmpi sgt, %arg0, %c0_i32_7 : i32
      %17 = arith.extui %16 : i1 to i32
      %c0_i32_8 = arith.constant 0 : i32
      %18 = arith.cmpi ne, %17, %c0_i32_8 : i32
      scf.if %18 {
        %c0 = arith.constant 0 : index
        %c0_11 = arith.constant 0 : index
        %22 = vector.load %arg13[%c0, %c0_11] : memref<1x128xf32, #tpu.memory_space<vmem>>, vector<1x128xf32>
        %cst = arith.constant 0.00166666671 : f32
        %23 = vector.broadcast %cst : f32 to vector<1x128xf32>
        %24 = arith.mulf %22, %23 : vector<1x128xf32>
        %c0_12 = arith.constant 0 : index
        %c0_13 = arith.constant 0 : index
        %25 = vector.load %arg14[%c0_12, %c0_13] : memref<1x128xf32, #tpu.memory_space<vmem>>, vector<1x128xf32>
        %cst_14 = arith.constant 0.00166666671 : f32
        %26 = vector.broadcast %cst_14 : f32 to vector<1x128xf32>
        %27 = arith.mulf %25, %26 : vector<1x128xf32>
        %28 = arith.mulf %24, %24 : vector<1x128xf32>
        %29 = arith.subf %27, %28 : vector<1x128xf32>
        %cst_15 = arith.constant 0.000000e+00 : f32
        %30 = vector.broadcast %cst_15 : f32 to vector<1x128xf32>
        %31 = arith.maximumf %29, %30 : vector<1x128xf32>
        %cst_16 = arith.constant 9.99999974E-6 : f32
        %32 = vector.broadcast %cst_16 : f32 to vector<1x128xf32>
        %33 = arith.addf %31, %32 : vector<1x128xf32>
        %34 = math.rsqrt %33 : vector<1x128xf32>
        %c1_i32 = arith.constant 1 : i32
        %35 = arith.subi %arg0, %c1_i32 : i32
        %36 = arith.index_cast %35 : i32 to index
        %c0_17 = arith.constant 0 : index
        %c0_18 = arith.constant 0 : index
        %37 = vector.load %arg9[%36, %c0_17, %c0_18] : memref<2x1x128xf32, #tpu.memory_space<vmem>>, vector<1x1x128xf32>
        %38 = vector.shape_cast %37 : vector<1x1x128xf32> to vector<1x128xf32>
        %39 = arith.mulf %38, %34 : vector<1x128xf32>
        %c1_i32_19 = arith.constant 1 : i32
        %40 = arith.subi %arg0, %c1_i32_19 : i32
        %41 = arith.index_cast %40 : i32 to index
        %c0_20 = arith.constant 0 : index
        %c0_21 = arith.constant 0 : index
        %42 = vector.load %arg10[%41, %c0_20, %c0_21] : memref<2x1x128xf32, #tpu.memory_space<vmem>>, vector<1x1x128xf32>
        %43 = vector.shape_cast %42 : vector<1x1x128xf32> to vector<1x128xf32>
        %44 = arith.mulf %24, %39 : vector<1x128xf32>
        %45 = arith.subf %43, %44 : vector<1x128xf32>
        %46 = tpu.iota {dimensions = array<i32: 0>} : vector<128x128xi32>
        %47 = tpu.iota {dimensions = array<i32: 1>} : vector<128x128xi32>
        %48 = arith.cmpi eq, %46, %47 : vector<128x128xi32>
        %49 = vector.shape_cast %39 : vector<1x128xf32> to vector<1x128xf32>
        %50 = vector.broadcast %49 : vector<1x128xf32> to vector<128x128xf32>
        %cst_22 = arith.constant 0.000000e+00 : f32
        %51 = vector.broadcast %cst_22 : f32 to vector<128x128xf32>
        %52 = arith.select %48, %50, %51 : vector<128x128xi1>, vector<128x128xf32>
        %53 = vector.shape_cast %45 : vector<1x128xf32> to vector<1x128xf32>
        %54 = vector.broadcast %53 : vector<1x128xf32> to vector<8x128xf32>
        %c2_i32_23 = arith.constant 2 : i32
        %55 = arith.cmpi slt, %arg0, %c2_i32_23 : i32
        %56 = arith.extui %55 : i1 to i32
        %c0_i32_24 = arith.constant 0 : i32
        %57 = arith.cmpi ne, %56, %c0_i32_24 : i32
        scf.if %57 {
          %c1_i32_27 = arith.constant 1 : i32
          %61 = arith.subi %arg0, %c1_i32_27 : i32
          %62 = arith.index_cast %61 : i32 to index
          %c0_28 = arith.constant 0 : index
          %c0_29 = arith.constant 0 : index
          %63 = vector.load %arg5[%62, %c0_28, %c0_29] : memref<1x128x128xbf16, #tpu.memory_space<vmem>>, vector<1x128x128xbf16>
          %64 = vector.shape_cast %63 : vector<1x128x128xbf16> to vector<128x128xbf16>
          %65 = arith.extf %64 : vector<128x128xbf16> to vector<128x128xf32>
          %cst_30 = arith.constant dense<0.000000e+00> : vector<128x128xf32>
          %66 = tpu.matmul %52, %65, %cst_30 {dimension_numbers = #tpu.dot_dimension_numbers<[1], [0], [0], [1], [0, 0, 1, 1], [], []>} : vector<128x128xf32>, vector<128x128xf32>, vector<128x128xf32> -> vector<128x128xf32>
          %67 = arith.truncf %66 : vector<128x128xf32> to vector<128x128xbf16>
          %c0_31 = arith.constant 0 : index
          %c0_32 = arith.constant 0 : index
          %68 = vector.load %arg15[%c0_31, %c0_32] : memref<128x128xbf16, #tpu.memory_space<vmem>>, vector<128x128xbf16>
          tpu.vector_store %arg15[%c0_31, %c0_32], %67 {strides = array<i32>} : memref<128x128xbf16, #tpu.memory_space<vmem>>, vector<128x128xbf16>,
          %c1_i32_33 = arith.constant 1 : i32
          %69 = arith.subi %arg0, %c1_i32_33 : i32
          %70 = arith.index_cast %69 : i32 to index
          %c0_34 = arith.constant 0 : index
          %c0_35 = arith.constant 0 : index
          %71 = vector.load %arg6[%70, %c0_34, %c0_35] : memref<1x1x128xf32, #tpu.memory_space<vmem>>, vector<1x1x128xf32>
          %72 = vector.shape_cast %71 : vector<1x1x128xf32> to vector<1x128xf32>
          %cst_36 = arith.constant dense<0.000000e+00> : vector<8x128xf32>
          %73 = tpu.matmul %54, %65, %cst_36 {dimension_numbers = #tpu.dot_dimension_numbers<[1], [0], [0], [1], [0, 0, 1, 1], [], []>} : vector<8x128xf32>, vector<128x128xf32>, vector<8x128xf32> -> vector<8x128xf32>
          %74 = vector.extract_strided_slice %73 {offsets = [0, 0], sizes = [1, 128], strides = [1, 1]} : vector<8x128xf32> to vector<1x128xf32>
          %75 = arith.addf %72, %74 : vector<1x128xf32>
          %c0_37 = arith.constant 0 : index
          %c0_38 = arith.constant 0 : index
          %76 = vector.load %arg16[%c0_37, %c0_38] : memref<1x128xf32, #tpu.memory_space<vmem>>, vector<1x128xf32>
          tpu.vector_store %arg16[%c0_37, %c0_38], %75 {strides = array<i32>} : memref<1x128xf32, #tpu.memory_space<vmem>>, vector<1x128xf32>,
        } else {
        }
        %c2_i32_25 = arith.constant 2 : i32
        %58 = arith.cmpi eq, %arg0, %c2_i32_25 : i32
        %59 = arith.extui %58 : i1 to i32
        %c0_i32_26 = arith.constant 0 : i32
        %60 = arith.cmpi ne, %59, %c0_i32_26 : i32
        scf.if %60 {
          %c0_27 = arith.constant 0 : index
          %c0_28 = arith.constant 0 : index
          %61 = vector.load %arg7[%c0_27, %c0_28] : memref<128x128xbf16, #tpu.memory_space<vmem>>, vector<128x128xbf16>
          %62 = arith.extf %61 : vector<128x128xbf16> to vector<128x128xf32>
          %cst_29 = arith.constant dense<0.000000e+00> : vector<128x128xf32>
          %63 = tpu.matmul %52, %62, %cst_29 {dimension_numbers = #tpu.dot_dimension_numbers<[1], [0], [0], [1], [0, 0, 1, 1], [], []>} : vector<128x128xf32>, vector<128x128xf32>, vector<128x128xf32> -> vector<128x128xf32>
          %64 = arith.truncf %63 : vector<128x128xf32> to vector<128x128xbf16>
          %c0_30 = arith.constant 0 : index
          %c0_31 = arith.constant 0 : index
          %65 = vector.load %arg17[%c0_30, %c0_31] : memref<128x128xbf16, #tpu.memory_space<vmem>>, vector<128x128xbf16>
          tpu.vector_store %arg17[%c0_30, %c0_31], %64 {strides = array<i32>} : memref<128x128xbf16, #tpu.memory_space<vmem>>, vector<128x128xbf16>,
          %c0_32 = arith.constant 0 : index
          %c0_33 = arith.constant 0 : index
          %66 = vector.load %arg8[%c0_32, %c0_33] : memref<1x128xf32, #tpu.memory_space<vmem>>, vector<1x128xf32>
          %cst_34 = arith.constant dense<0.000000e+00> : vector<8x128xf32>
          %67 = tpu.matmul %54, %62, %cst_34 {dimension_numbers = #tpu.dot_dimension_numbers<[1], [0], [0], [1], [0, 0, 1, 1], [], []>} : vector<8x128xf32>, vector<128x128xf32>, vector<8x128xf32> -> vector<8x128xf32>
          %68 = vector.extract_strided_slice %67 {offsets = [0, 0], sizes = [1, 128], strides = [1, 1]} : vector<8x128xf32> to vector<1x128xf32>
          %69 = arith.addf %66, %68 : vector<1x128xf32>
          %c0_35 = arith.constant 0 : index
          %c0_36 = arith.constant 0 : index
          %70 = vector.load %arg18[%c0_35, %c0_36] : memref<1x128xf32, #tpu.memory_space<vmem>>, vector<1x128xf32>
          tpu.vector_store %arg18[%c0_35, %c0_36], %69 {strides = array<i32>} : memref<1x128xf32, #tpu.memory_space<vmem>>, vector<1x128xf32>,
        } else {
        }
      } else {
      }
      %c2_i32_9 = arith.constant 2 : i32
      %19 = arith.cmpi slt, %arg0, %c2_i32_9 : i32
      %20 = arith.extui %19 : i1 to i32
      %c0_i32_10 = arith.constant 0 : i32
      %21 = arith.cmpi ne, %20, %c0_i32_10 : i32
      scf.if %21 {
        %cst = arith.constant 0.000000e+00 : f32
        %22 = vector.broadcast %cst : f32 to vector<1x128xf32>
        %c0 = arith.constant 0 : index
        %c0_11 = arith.constant 0 : index
        %23 = vector.load %arg13[%c0, %c0_11] : memref<1x128xf32, #tpu.memory_space<vmem>>, vector<1x128xf32>
        tpu.vector_store %arg13[%c0, %c0_11], %22 {strides = array<i32>} : memref<1x128xf32, #tpu.memory_space<vmem>>, vector<1x128xf32>,
        %cst_12 = arith.constant 0.000000e+00 : f32
        %24 = vector.broadcast %cst_12 : f32 to vector<1x128xf32>
        %c0_13 = arith.constant 0 : index
        %c0_14 = arith.constant 0 : index
        %25 = vector.load %arg14[%c0_13, %c0_14] : memref<1x128xf32, #tpu.memory_space<vmem>>, vector<1x128xf32>
        tpu.vector_store %arg14[%c0_13, %c0_14], %24 {strides = array<i32>} : memref<1x128xf32, #tpu.memory_space<vmem>>, vector<1x128xf32>,
      } else {
      }
    } else {
    }
    %c256_i32 = arith.constant 256 : i32
    %3 = arith.muli %arg1, %c256_i32 : i32
    %4 = tpu.assume_multiple %3, 256 : i32
    %c0_i32_1 = arith.constant 0 : i32
    %5 = arith.cmpi eq, %arg0, %c0_i32_1 : i32
    %6 = arith.extui %5 : i1 to i32
    %c0_i32_2 = arith.constant 0 : i32
    %7 = arith.cmpi ne, %6, %c0_i32_2 : i32
    scf.if %7 {
      %c0 = arith.constant 0 : index
      %c0_7 = arith.constant 0 : index
      %16 = vector.load %arg2[%c0, %c0_7] : memref<256x128xbf16, #tpu.memory_space<vmem>>, vector<256x128xbf16>
      %c0_8 = arith.constant 0 : index
      %c0_9 = arith.constant 0 : index
      %17 = vector.load %arg3[%c0_8, %c0_9] : memref<128x128xbf16, #tpu.memory_space<vmem>>, vector<128x128xbf16>
      %cst = arith.constant dense<0.000000e+00> : vector<256x128xf32>
      %18 = tpu.matmul %16, %17, %cst {dimension_numbers = #tpu.dot_dimension_numbers<[1], [0], [0], [1], [0, 0, 1, 1], [], []>} : vector<256x128xbf16>, vector<128x128xbf16>, vector<256x128xf32> -> vector<256x128xf32>
      %c0_10 = arith.constant 0 : index
      %c0_11 = arith.constant 0 : index
      %19 = vector.load %arg4[%c0_10, %c0_11] : memref<1x128xf32, #tpu.memory_space<vmem>>, vector<1x128xf32>
      %20 = vector.broadcast %19 : vector<1x128xf32> to vector<256x128xf32>
      %21 = arith.addf %18, %20 : vector<256x128xf32>
      %cst_12 = arith.constant 0.000000e+00 : f32
      %22 = vector.broadcast %cst_12 : f32 to vector<256x128xf32>
      %23 = arith.maximumf %21, %22 : vector<256x128xf32>
      %24 = arith.truncf %23 : vector<256x128xf32> to vector<256x128xbf16>
      %25 = arith.index_cast %4 : i32 to index
      %c0_13 = arith.constant 0 : index
      %26 = vector.load %arg12[%25, %c0_13] : memref<768x128xbf16, #tpu.memory_space<vmem>>, vector<256x128xbf16>
      tpu.vector_store %arg12[%25, %c0_13], %24 {strides = array<i32>} : memref<768x128xbf16, #tpu.memory_space<vmem>>, vector<256x128xbf16>,
      %27 = tpu.iota {dimensions = array<i32: 0>} : vector<256x128xi32>
      %28 = vector.broadcast %4 : i32 to vector<256x128xi32>
      %29 = arith.addi %28, %27 : vector<256x128xi32>
      %c600_i32 = arith.constant 600 : i32
      %30 = vector.broadcast %c600_i32 : i32 to vector<256x128xi32>
      %31 = arith.cmpi slt, %29, %30 : vector<256x128xi32>
      %cst_14 = arith.constant 0.000000e+00 : f32
      %32 = vector.broadcast %cst_14 : f32 to vector<256x128xf32>
      %33 = arith.select %31, %23, %32 : vector<256x128xi1>, vector<256x128xf32>
      %c0_15 = arith.constant 0 : index
      %c0_16 = arith.constant 0 : index
      %34 = vector.load %arg13[%c0_15, %c0_16] : memref<1x128xf32, #tpu.memory_space<vmem>>, vector<1x128xf32>
      %cst_17 = arith.constant dense<0.000000e+00> : vector<128xf32>
      %35 = vector.multi_reduction <add>, %33, %cst_17 [0] : vector<256x128xf32> to vector<128xf32>
      %36 = vector.shape_cast %35 : vector<128xf32> to vector<1x128xf32>
      %37 = arith.addf %34, %36 : vector<1x128xf32>
      %c0_18 = arith.constant 0 : index
      %c0_19 = arith.constant 0 : index
      %38 = vector.load %arg13[%c0_18, %c0_19] : memref<1x128xf32, #tpu.memory_space<vmem>>, vector<1x128xf32>
      tpu.vector_store %arg13[%c0_18, %c0_19], %37 {strides = array<i32>} : memref<1x128xf32, #tpu.memory_space<vmem>>, vector<1x128xf32>,
      %c0_20 = arith.constant 0 : index
      %c0_21 = arith.constant 0 : index
      %39 = vector.load %arg14[%c0_20, %c0_21] : memref<1x128xf32, #tpu.memory_space<vmem>>, vector<1x128xf32>
      %40 = arith.mulf %33, %33 : vector<256x128xf32>
      %cst_22 = arith.constant dense<0.000000e+00> : vector<128xf32>
      %41 = vector.multi_reduction <add>, %40, %cst_22 [0] : vector<256x128xf32> to vector<128xf32>
      %42 = vector.shape_cast %41 : vector<128xf32> to vector<1x128xf32>
      %43 = arith.addf %39, %42 : vector<1x128xf32>
      %c0_23 = arith.constant 0 : index
      %c0_24 = arith.constant 0 : index
      %44 = vector.load %arg14[%c0_23, %c0_24] : memref<1x128xf32, #tpu.memory_space<vmem>>, vector<1x128xf32>
      tpu.vector_store %arg14[%c0_23, %c0_24], %43 {strides = array<i32>} : memref<1x128xf32, #tpu.memory_space<vmem>>, vector<1x128xf32>,
    } else {
    }
    %c0_i32_3 = arith.constant 0 : i32
    %8 = arith.cmpi sgt, %arg0, %c0_i32_3 : i32
    %c2_i32 = arith.constant 2 : i32
    %9 = arith.cmpi slt, %arg0, %c2_i32 : i32
    %10 = arith.andi %8, %9 : i1
    %11 = arith.extui %10 : i1 to i32
    %c0_i32_4 = arith.constant 0 : i32
    %12 = arith.cmpi ne, %11, %c0_i32_4 : i32
    scf.if %12 {
      %16 = arith.index_cast %4 : i32 to index
      %c0 = arith.constant 0 : index
      %17 = vector.load %arg12[%16, %c0] : memref<768x128xbf16, #tpu.memory_space<vmem>>, vector<256x128xbf16>
      %c0_7 = arith.constant 0 : index
      %c0_8 = arith.constant 0 : index
      %18 = vector.load %arg15[%c0_7, %c0_8] : memref<128x128xbf16, #tpu.memory_space<vmem>>, vector<128x128xbf16>
      %cst = arith.constant dense<0.000000e+00> : vector<256x128xf32>
      %19 = tpu.matmul %17, %18, %cst {dimension_numbers = #tpu.dot_dimension_numbers<[1], [0], [0], [1], [0, 0, 1, 1], [], []>} : vector<256x128xbf16>, vector<128x128xbf16>, vector<256x128xf32> -> vector<256x128xf32>
      %c0_9 = arith.constant 0 : index
      %c0_10 = arith.constant 0 : index
      %20 = vector.load %arg16[%c0_9, %c0_10] : memref<1x128xf32, #tpu.memory_space<vmem>>, vector<1x128xf32>
      %21 = vector.broadcast %20 : vector<1x128xf32> to vector<256x128xf32>
      %22 = arith.addf %19, %21 : vector<256x128xf32>
      %cst_11 = arith.constant 0.000000e+00 : f32
      %23 = vector.broadcast %cst_11 : f32 to vector<256x128xf32>
      %24 = arith.maximumf %22, %23 : vector<256x128xf32>
      %25 = arith.truncf %24 : vector<256x128xf32> to vector<256x128xbf16>
      %26 = arith.index_cast %4 : i32 to index
      %c0_12 = arith.constant 0 : index
      %27 = vector.load %arg12[%26, %c0_12] : memref<768x128xbf16, #tpu.memory_space<vmem>>, vector<256x128xbf16>
      tpu.vector_store %arg12[%26, %c0_12], %25 {strides = array<i32>} : memref<768x128xbf16, #tpu.memory_space<vmem>>, vector<256x128xbf16>,
      %28 = tpu.iota {dimensions = array<i32: 0>} : vector<256x128xi32>
      %29 = vector.broadcast %4 : i32 to vector<256x128xi32>
      %30 = arith.addi %29, %28 : vector<256x128xi32>
      %c600_i32 = arith.constant 600 : i32
      %31 = vector.broadcast %c600_i32 : i32 to vector<256x128xi32>
      %32 = arith.cmpi slt, %30, %31 : vector<256x128xi32>
      %cst_13 = arith.constant 0.000000e+00 : f32
      %33 = vector.broadcast %cst_13 : f32 to vector<256x128xf32>
      %34 = arith.select %32, %24, %33 : vector<256x128xi1>, vector<256x128xf32>
      %c0_14 = arith.constant 0 : index
      %c0_15 = arith.constant 0 : index
      %35 = vector.load %arg13[%c0_14, %c0_15] : memref<1x128xf32, #tpu.memory_space<vmem>>, vector<1x128xf32>
      %cst_16 = arith.constant dense<0.000000e+00> : vector<128xf32>
      %36 = vector.multi_reduction <add>, %34, %cst_16 [0] : vector<256x128xf32> to vector<128xf32>
      %37 = vector.shape_cast %36 : vector<128xf32> to vector<1x128xf32>
      %38 = arith.addf %35, %37 : vector<1x128xf32>
      %c0_17 = arith.constant 0 : index
      %c0_18 = arith.constant 0 : index
      %39 = vector.load %arg13[%c0_17, %c0_18] : memref<1x128xf32, #tpu.memory_space<vmem>>, vector<1x128xf32>
      tpu.vector_store %arg13[%c0_17, %c0_18], %38 {strides = array<i32>} : memref<1x128xf32, #tpu.memory_space<vmem>>, vector<1x128xf32>,
      %c0_19 = arith.constant 0 : index
      %c0_20 = arith.constant 0 : index
      %40 = vector.load %arg14[%c0_19, %c0_20] : memref<1x128xf32, #tpu.memory_space<vmem>>, vector<1x128xf32>
      %41 = arith.mulf %34, %34 : vector<256x128xf32>
      %cst_21 = arith.constant dense<0.000000e+00> : vector<128xf32>
      %42 = vector.multi_reduction <add>, %41, %cst_21 [0] : vector<256x128xf32> to vector<128xf32>
      %43 = vector.shape_cast %42 : vector<128xf32> to vector<1x128xf32>
      %44 = arith.addf %40, %43 : vector<1x128xf32>
      %c0_22 = arith.constant 0 : index
      %c0_23 = arith.constant 0 : index
      %45 = vector.load %arg14[%c0_22, %c0_23] : memref<1x128xf32, #tpu.memory_space<vmem>>, vector<1x128xf32>
      tpu.vector_store %arg14[%c0_22, %c0_23], %44 {strides = array<i32>} : memref<1x128xf32, #tpu.memory_space<vmem>>, vector<1x128xf32>,
    } else {
    }
    %c2_i32_5 = arith.constant 2 : i32
    %13 = arith.cmpi eq, %arg0, %c2_i32_5 : i32
    %14 = arith.extui %13 : i1 to i32
    %c0_i32_6 = arith.constant 0 : i32
    %15 = arith.cmpi ne, %14, %c0_i32_6 : i32
    scf.if %15 {
      %16 = arith.index_cast %4 : i32 to index
      %c0 = arith.constant 0 : index
      %17 = vector.load %arg12[%16, %c0] : memref<768x128xbf16, #tpu.memory_space<vmem>>, vector<256x128xbf16>
      %c0_7 = arith.constant 0 : index
      %c0_8 = arith.constant 0 : index
      %18 = vector.load %arg17[%c0_7, %c0_8] : memref<128x128xbf16, #tpu.memory_space<vmem>>, vector<128x128xbf16>
      %cst = arith.constant dense<0.000000e+00> : vector<256x128xf32>
      %19 = tpu.matmul %17, %18, %cst {dimension_numbers = #tpu.dot_dimension_numbers<[1], [0], [0], [1], [0, 0, 1, 1], [], []>} : vector<256x128xbf16>, vector<128x128xbf16>, vector<256x128xf32> -> vector<256x128xf32>
      %c0_9 = arith.constant 0 : index
      %c0_10 = arith.constant 0 : index
      %20 = vector.load %arg18[%c0_9, %c0_10] : memref<1x128xf32, #tpu.memory_space<vmem>>, vector<1x128xf32>
      %21 = vector.broadcast %20 : vector<1x128xf32> to vector<256x128xf32>
      %22 = arith.addf %19, %21 : vector<256x128xf32>
      %c0_11 = arith.constant 0 : index
      %c0_12 = arith.constant 0 : index
      %23 = vector.load %arg11[%c0_11, %c0_12] : memref<256x128xf32, #tpu.memory_space<vmem>>, vector<256x128xf32>
      tpu.vector_store %arg11[%c0_11, %c0_12], %22 {strides = array<i32>} : memref<256x128xf32, #tpu.memory_space<vmem>>, vector<256x128xf32>,
    } else {
    }
    return
  }
  func.func @transform_0(%arg0: i32, %arg1: i32) -> (i32, i32) {
    %c0_i32 = arith.constant 0 : i32
    %0 = arith.cmpi eq, %arg0, %c0_i32 : i32
    %c2_i32 = arith.constant 2 : i32
    %1 = arith.select %0, %arg1, %c2_i32 : i32
    %c0_i32_0 = arith.constant 0 : i32
    %c0_i32_1 = arith.constant 0 : i32
    return %1, %c0_i32_0 : i32, i32
  }
  func.func @transform_1(%arg0: i32, %arg1: i32) -> (i32, i32) {
    %c0_i32 = arith.constant 0 : i32
    %c0_i32_0 = arith.constant 0 : i32
    %c0_i32_1 = arith.constant 0 : i32
    return %c0_i32, %c0_i32_0 : i32, i32
  }
  func.func @transform_2(%arg0: i32, %arg1: i32) -> (i32, i32) {
    %c0_i32 = arith.constant 0 : i32
    %c0_i32_0 = arith.constant 0 : i32
    %c0_i32_1 = arith.constant 0 : i32
    return %c0_i32, %c0_i32_0 : i32, i32
  }
  func.func @transform_3(%arg0: i32, %arg1: i32) -> (i32, i32, i32) {
    %c0_i32 = arith.constant 0 : i32
    %c0_i32_0 = arith.constant 0 : i32
    %c0_i32_1 = arith.constant 0 : i32
    %c0_i32_2 = arith.constant 0 : i32
    return %c0_i32, %c0_i32_0, %c0_i32_1 : i32, i32, i32
  }
  func.func @transform_4(%arg0: i32, %arg1: i32) -> (i32, i32, i32) {
    %c0_i32 = arith.constant 0 : i32
    %c0_i32_0 = arith.constant 0 : i32
    %c0_i32_1 = arith.constant 0 : i32
    %c0_i32_2 = arith.constant 0 : i32
    return %c0_i32, %c0_i32_0, %c0_i32_1 : i32, i32, i32
  }
  func.func @transform_5(%arg0: i32, %arg1: i32) -> (i32, i32) {
    %c0_i32 = arith.constant 0 : i32
    %c0_i32_0 = arith.constant 0 : i32
    %c0_i32_1 = arith.constant 0 : i32
    return %c0_i32, %c0_i32_0 : i32, i32
  }
  func.func @transform_6(%arg0: i32, %arg1: i32) -> (i32, i32) {
    %c0_i32 = arith.constant 0 : i32
    %c0_i32_0 = arith.constant 0 : i32
    %c0_i32_1 = arith.constant 0 : i32
    return %c0_i32, %c0_i32_0 : i32, i32
  }
  func.func @transform_7(%arg0: i32, %arg1: i32) -> (i32, i32, i32) {
    %c0_i32 = arith.constant 0 : i32
    %c0_i32_0 = arith.constant 0 : i32
    %c0_i32_1 = arith.constant 0 : i32
    %c0_i32_2 = arith.constant 0 : i32
    return %c0_i32, %c0_i32_0, %c0_i32_1 : i32, i32, i32
  }
  func.func @transform_8(%arg0: i32, %arg1: i32) -> (i32, i32, i32) {
    %c0_i32 = arith.constant 0 : i32
    %c0_i32_0 = arith.constant 0 : i32
    %c0_i32_1 = arith.constant 0 : i32
    %c0_i32_2 = arith.constant 0 : i32
    return %c0_i32, %c0_i32_0, %c0_i32_1 : i32, i32, i32
  }
  func.func @transform_9(%arg0: i32, %arg1: i32) -> (i32, i32) {
    %c2_i32 = arith.constant 2 : i32
    %0 = arith.cmpi eq, %arg0, %c2_i32 : i32
    %c0_i32 = arith.constant 0 : i32
    %1 = arith.select %0, %arg1, %c0_i32 : i32
    %c0_i32_0 = arith.constant 0 : i32
    %c0_i32_1 = arith.constant 0 : i32
    return %1, %c0_i32_0 : i32, i32
  }
}

</mosaic_0001>

<llo_original>
// kernel: mlp_forward.1
$region0: #{mlp_forward.1}
  #allocation0 [shape = 'u32[]', space=smem, size = 0x4, offset = 0x4, fixed_abs, tag = 'smem constant byte address 0x4 - core index']
  #allocation1 [shape = 'u32[144,128]{1,0:T(1,128)}', space=vmem, size = 0x12000, scoped, tag = 'internal scratch']
  #allocation2 [shape = 'bf16[768,128]{1,0:T(16,128)(2,1)}', space=vmem, size = 0x30000, scoped, tag = 'scratch operand']
  #allocation3 [shape = 'f32[1,128]{1,0:T(1,128)}', space=vmem, size = 0x200, scoped, tag = 'scratch operand']
  #allocation4 [shape = 'f32[1,128]{1,0:T(1,128)}', space=vmem, size = 0x200, scoped, tag = 'scratch operand']
  #allocation5 [shape = 'bf16[128,128]{1,0:T(16,128)(2,1)}', space=vmem, size = 0x8000, scoped, tag = 'scratch operand']
  #allocation6 [shape = 'f32[1,128]{1,0:T(1,128)}', space=vmem, size = 0x200, scoped, tag = 'scratch operand']
  #allocation7 [shape = 'bf16[128,128]{1,0:T(16,128)(2,1)}', space=vmem, size = 0x8000, scoped, tag = 'scratch operand']
  #allocation8 [shape = 'f32[1,128]{1,0:T(1,128)}', space=vmem, size = 0x200, scoped, tag = 'scratch operand']
  %s0 = inlined_call_operand.vmem [shape: bf16[768,128], index: 0, kind: input, shape index: {}]
  %s1 = inlined_call_operand.vmem [shape: bf16[128,128], index: 1, kind: input, shape index: {}]
  %s2 = inlined_call_operand.vmem [shape: f32[1,128], index: 2, kind: input, shape index: {}]
  %s3 = inlined_call_operand.vmem [shape: bf16[1,128,128], index: 3, kind: input, shape index: {}]
  %s4 = inlined_call_operand.vmem [shape: f32[1,1,128], index: 4, kind: input, shape index: {}]
  %s5 = inlined_call_operand.vmem [shape: bf16[128,128], index: 5, kind: input, shape index: {}]
  %s6 = inlined_call_operand.vmem [shape: f32[1,128], index: 6, kind: input, shape index: {}]
  %s7 = inlined_call_operand.vmem [shape: f32[2,1,128], index: 7, kind: input, shape index: {}]
  %s8 = inlined_call_operand.vmem [shape: f32[2,1,128], index: 8, kind: input, shape index: {}]
  %s9 = inlined_call_operand.vmem [shape: f32[768,128], index: 9, kind: output, shape index: {}]
  %s10 = sld [smem:[#allocation0]]
  $region101: #{mlp_forward.1} parent=0
    _
  %s12 = ssub.s32 1, %s10
  %s13 = scalar_select 0, %s12, %s10
  loop: start=0, step=1, limit=11
  $region2: #{mlp_forward.1} parent=0 // loop_pre_header
    _
  $region3: #{mlp_forward.1} parent=0 // loop_header
    %s15 = sphi 0, %s19
    %p16 = scmp.ge.s32.totalorder %s15, 11
    %s22 = sphi 0, %s34
    %s23 = sphi 0, %s30
    %s24 = sphi 0, %s22
    %s25 = sphi 0, %s23
    %s26 = sphi 0, %s24
    %s27 = sphi 0, %s25
    %s41 = sphi 0, %s43
    %s44 = sphi 0, %s41
    %s45 = sphi 0, %s44
    %s61 = sphi 0, %s45
    %s65 = sphi 0, %s65
    %s67 = sphi 0, %s65
    %s68 = sphi 0, %s67
    %s82 = sphi 0, %s68
    %s86 = sphi 0, %s86
    %s88 = sphi 0, %s86
    %s89 = sphi 0, %s88
    %s103 = sphi 0, %s89
    %s107 = sphi 0, %s107
    %s109 = sphi 0, %s107
    %s110 = sphi 0, %s109
    %s124 = sphi 0, %s110
    %s128 = sphi 0, %s128
    %s130 = sphi 0, %s128
    %s131 = sphi 0, %s130
    %s145 = sphi 0, %s131
    %s149 = sphi 0, %s149
    %s151 = sphi 0, %s149
    %s152 = sphi 0, %s151
    %s166 = sphi 0, %s152
    %s170 = sphi 0, %s170
    %s172 = sphi 0, %s170
    %s173 = sphi 0, %s172
    %s187 = sphi 0, %s173
    %s191 = sphi 0, %s191
    %s193 = sphi 0, %s191
    %s194 = sphi 0, %s193
    %s208 = sphi 0, %s194
    %s212 = sphi 0, %s212
    %s214 = sphi 0, %s212
    %s215 = sphi 0, %s214
    %s229 = sphi 0, %s215
    %s239 = sphi 0, %s241
    %s242 = sphi 0, %s239
    %s243 = sphi 0, %s242
    %s259 = sphi 0, %s243
  $region4: #{mlp_forward.1} parent=0 // loop_header_branch
    %18 = sbr.rel (%p16) target = $region8
  $region5: #{mlp_forward.1} parent=0 // loop_body
    %s20 = ssub.s32 %s15, 1
    %s21 = ssub.s32 %s15, 2
    %s28 = sadd.s32 1, %s23
    %p29 = scmp.ge.s32.totalorder %s28, 3
    %s30 = scalar_select %p29, 0, %s28
    %s31 = sadd.s32 1, %s22
    %s32 = scalar_select %p29, %s31, %s22
    %p33 = scmp.ge.s32.totalorder %s32, 3
    %s34 = scalar_select %p33, 0, %s32
    %p35 = scmp.eq.s32.totalorder %s22, 0
    %s36 = scalar_select %p35, %s23, 2
    %p37 = scmp.eq.s32.totalorder %s34, 0
    %s38 = scalar_select %p37, %s30, 2
    %s39 = ssub.s32 %s36, %s38
    %p40 = scmp.eq.s32.totalorder %s39, 0
    %s42 = sadd.s32 %s41, 1
    %s43 = scalar_select %p40, %s41, %s42
    %p46 = pneg %p40
    %p47 = scmp.eq.s32.totalorder %s15, 8
    %p48 = por %p46, %p47
    %p49 = scmp.ne.s32.totalorder %s41, %s44
    %p50 = scmp.eq.s32.totalorder %s15, 0
    %p51 = por %p49, %p50
    %p52 = scmp.ne.s32.totalorder %s41, %s44
    %p53 = scmp.eq.s32.totalorder %s20, 8
    %p54 = por %p52, %p53
    %p55 = scmp.ne.s32.totalorder %s44, %s45
    %p56 = scmp.eq.s32.totalorder %s20, 0
    %p57 = por %p55, %p56
    %p58 = scmp.ne.s32.totalorder %s44, %s45
    %p59 = scmp.eq.s32.totalorder %s21, 8
    %p60 = por %p58, %p59
    %p62 = scmp.ne.s32.totalorder %s45, %s61
    %p63 = scmp.eq.s32.totalorder %s21, 0
    %p64 = por %p62, %p63
    %s66 = sadd.s32 %s65, 1
    %p69 = scmp.eq.s32.totalorder %s15, 8
    %p70 = scmp.ne.s32.totalorder %s65, %s67
    %p71 = scmp.eq.s32.totalorder %s15, 0
    %p72 = por %p70, %p71
    %p73 = scmp.ne.s32.totalorder %s65, %s67
    %p74 = scmp.eq.s32.totalorder %s20, 8
    %p75 = por %p73, %p74
    %p76 = scmp.ne.s32.totalorder %s67, %s68
    %p77 = scmp.eq.s32.totalorder %s20, 0
    %p78 = por %p76, %p77
    %p79 = scmp.ne.s32.totalorder %s67, %s68
    %p80 = scmp.eq.s32.totalorder %s21, 8
    %p81 = por %p79, %p80
    %p83 = scmp.ne.s32.totalorder %s68, %s82
    %p84 = scmp.eq.s32.totalorder %s21, 0
    %p85 = por %p83, %p84
    %s87 = sadd.s32 %s86, 1
    %p90 = scmp.eq.s32.totalorder %s15, 8
    %p91 = scmp.ne.s32.totalorder %s86, %s88
    %p92 = scmp.eq.s32.totalorder %s15, 0
    %p93 = por %p91, %p92
    %p94 = scmp.ne.s32.totalorder %s86, %s88
    %p95 = scmp.eq.s32.totalorder %s20, 8
    %p96 = por %p94, %p95
    %p97 = scmp.ne.s32.totalorder %s88, %s89
    %p98 = scmp.eq.s32.totalorder %s20, 0
    %p99 = por %p97, %p98
    %p100 = scmp.ne.s32.totalorder %s88, %s89
    %p101 = scmp.eq.s32.totalorder %s21, 8
    %p102 = por %p100, %p101
    %p104 = scmp.ne.s32.totalorder %s89, %s103
    %p105 = scmp.eq.s32.totalorder %s21, 0
    %p106 = por %p104, %p105
    %s108 = sadd.s32 %s107, 1
    %p111 = scmp.eq.s32.totalorder %s15, 8
    %p112 = scmp.ne.s32.totalorder %s107, %s109
    %p113 = scmp.eq.s32.totalorder %s15, 0
    %p114 = por %p112, %p113
    %p115 = scmp.ne.s32.totalorder %s107, %s109
    %p116 = scmp.eq.s32.totalorder %s20, 8
    %p117 = por %p115, %p116
    %p118 = scmp.ne.s32.totalorder %s109, %s110
    %p119 = scmp.eq.s32.totalorder %s20, 0
    %p120 = por %p118, %p119
    %p121 = scmp.ne.s32.totalorder %s109, %s110
    %p122 = scmp.eq.s32.totalorder %s21, 8
    %p123 = por %p121, %p122
    %p125 = scmp.ne.s32.totalorder %s110, %s124
    %p126 = scmp.eq.s32.totalorder %s21, 0
    %p127 = por %p125, %p126
    %s129 = sadd.s32 %s128, 1
    %p132 = scmp.eq.s32.totalorder %s15, 8
    %p133 = scmp.ne.s32.totalorder %s128, %s130
    %p134 = scmp.eq.s32.totalorder %s15, 0
    %p135 = por %p133, %p134
    %p136 = scmp.ne.s32.totalorder %s128, %s130
    %p137 = scmp.eq.s32.totalorder %s20, 8
    %p138 = por %p136, %p137
    %p139 = scmp.ne.s32.totalorder %s130, %s131
    %p140 = scmp.eq.s32.totalorder %s20, 0
    %p141 = por %p139, %p140
    %p142 = scmp.ne.s32.totalorder %s130, %s131
    %p143 = scmp.eq.s32.totalorder %s21, 8
    %p144 = por %p142, %p143
    %p146 = scmp.ne.s32.totalorder %s131, %s145
    %p147 = scmp.eq.s32.totalorder %s21, 0
    %p148 = por %p146, %p147
    %s150 = sadd.s32 %s149, 1
    %p153 = scmp.eq.s32.totalorder %s15, 8
    %p154 = scmp.ne.s32.totalorder %s149, %s151
    %p155 = scmp.eq.s32.totalorder %s15, 0
    %p156 = por %p154, %p155
    %p157 = scmp.ne.s32.totalorder %s149, %s151
    %p158 = scmp.eq.s32.totalorder %s20, 8
    %p159 = por %p157, %p158
    %p160 = scmp.ne.s32.totalorder %s151, %s152
    %p161 = scmp.eq.s32.totalorder %s20, 0
    %p162 = por %p160, %p161
    %p163 = scmp.ne.s32.totalorder %s151, %s152
    %p164 = scmp.eq.s32.totalorder %s21, 8
    %p165 = por %p163, %p164
    %p167 = scmp.ne.s32.totalorder %s152, %s166
    %p168 = scmp.eq.s32.totalorder %s21, 0
    %p169 = por %p167, %p168
    %s171 = sadd.s32 %s170, 1
    %p174 = scmp.eq.s32.totalorder %s15, 8
    %p175 = scmp.ne.s32.totalorder %s170, %s172
    %p176 = scmp.eq.s32.totalorder %s15, 0
    %p177 = por %p175, %p176
    %p178 = scmp.ne.s32.totalorder %s170, %s172
    %p179 = scmp.eq.s32.totalorder %s20, 8
    %p180 = por %p178, %p179
    %p181 = scmp.ne.s32.totalorder %s172, %s173
    %p182 = scmp.eq.s32.totalorder %s20, 0
    %p183 = por %p181, %p182
    %p184 = scmp.ne.s32.totalorder %s172, %s173
    %p185 = scmp.eq.s32.totalorder %s21, 8
    %p186 = por %p184, %p185
    %p188 = scmp.ne.s32.totalorder %s173, %s187
    %p189 = scmp.eq.s32.totalorder %s21, 0
    %p190 = por %p188, %p189
    %s192 = sadd.s32 %s191, 1
    %p195 = scmp.eq.s32.totalorder %s15, 8
    %p196 = scmp.ne.s32.totalorder %s191, %s193
    %p197 = scmp.eq.s32.totalorder %s15, 0
    %p198 = por %p196, %p197
    %p199 = scmp.ne.s32.totalorder %s191, %s193
    %p200 = scmp.eq.s32.totalorder %s20, 8
    %p201 = por %p199, %p200
    %p202 = scmp.ne.s32.totalorder %s193, %s194
    %p203 = scmp.eq.s32.totalorder %s20, 0
    %p204 = por %p202, %p203
    %p205 = scmp.ne.s32.totalorder %s193, %s194
    %p206 = scmp.eq.s32.totalorder %s21, 8
    %p207 = por %p205, %p206
    %p209 = scmp.ne.s32.totalorder %s194, %s208
    %p210 = scmp.eq.s32.totalorder %s21, 0
    %p211 = por %p209, %p210
    %s213 = sadd.s32 %s212, 1
    %p216 = scmp.eq.s32.totalorder %s15, 8
    %p217 = scmp.ne.s32.totalorder %s212, %s214
    %p218 = scmp.eq.s32.totalorder %s15, 0
    %p219 = por %p217, %p218
    %p220 = scmp.ne.s32.totalorder %s212, %s214
    %p221 = scmp.eq.s32.totalorder %s20, 8
    %p222 = por %p220, %p221
    %p223 = scmp.ne.s32.totalorder %s214, %s215
    %p224 = scmp.eq.s32.totalorder %s20, 0
    %p225 = por %p223, %p224
    %p226 = scmp.ne.s32.totalorder %s214, %s215
    %p227 = scmp.eq.s32.totalorder %s21, 8
    %p228 = por %p226, %p227
    %p230 = scmp.ne.s32.totalorder %s215, %s229
    %p231 = scmp.eq.s32.totalorder %s21, 0
    %p232 = por %p230, %p231
    %p233 = scmp.eq.s32.totalorder %s22, 2
    %s234 = scalar_select %p233, %s23, 0
    %p235 = scmp.eq.s32.totalorder %s34, 2
    %s236 = scalar_select %p235, %s30, 0
    %s237 = ssub.s32 %s234, %s236
    %p238 = scmp.eq.s32.totalorder %s237, 0
    %s240 = sadd.s32 %s239, 1
    %s241 = scalar_select %p238, %s239, %s240
    %p244 = pneg %p238
    %p245 = scmp.eq.s32.totalorder %s15, 8
    %p246 = por %p244, %p245
    %p247 = scmp.ne.s32.totalorder %s239, %s242
    %p248 = scmp.eq.s32.totalorder %s15, 0
    %p249 = por %p247, %p248
    %p250 = scmp.ne.s32.totalorder %s239, %s242
    %p251 = scmp.eq.s32.totalorder %s20, 8
    %p252 = por %p250, %p251
    %p253 = scmp.ne.s32.totalorder %s242, %s243
    %p254 = scmp.eq.s32.totalorder %s20, 0
    %p255 = por %p253, %p254
    %p256 = scmp.ne.s32.totalorder %s242, %s243
    %p257 = scmp.eq.s32.totalorder %s21, 8
    %p258 = por %p256, %p257
    %p260 = scmp.ne.s32.totalorder %s243, %s259
    %p261 = scmp.eq.s32.totalorder %s21, 0
    %p262 = por %p260, %p261
    %p263 = scmp.le.s32.totalorder 1, %s15
    %p264 = scmp.lt.s32.totalorder %s15, 10
    %p265 = pnand %p263, %p264
    %p266 = pneg %p265
    // Predicated region
    $region9: #{mlp_forward.1} parent=5 // pred_check
      _
    $region10: #{mlp_forward.1} parent=5 // pred_check_branch
      %268 = sbr.rel (%p265) target = $region12
    $region11: #{mlp_forward.1} parent=5 // pred_region
      %s269 = ssub.s32 %s15, 1
      // Predicated region
      $region13: #{mlp_forward.1} parent=11 // pred_check
        %p270 = pneg %p78
      $region14: #{mlp_forward.1} parent=11 // pred_check_branch
        %272 = sbr.rel (%p270) target = $region16
      $region15: #{mlp_forward.1} parent=11 // pred_region
        _
      $region16: #{mlp_forward.1} parent=11 // pred_fallthru
        _
      // Predicated region
      $region17: #{mlp_forward.1} parent=11 // pred_check
        %p273 = pneg %p99
      $region18: #{mlp_forward.1} parent=11 // pred_check_branch
        %275 = sbr.rel (%p273) target = $region20
      $region19: #{mlp_forward.1} parent=11 // pred_region
        _
      $region20: #{mlp_forward.1} parent=11 // pred_fallthru
        _
      // Predicated region
      $region21: #{mlp_forward.1} parent=11 // pred_check
        %p276 = pneg %p120
      $region22: #{mlp_forward.1} parent=11 // pred_check_branch
        %278 = sbr.rel (%p276) target = $region24
      $region23: #{mlp_forward.1} parent=11 // pred_region
        _
      $region24: #{mlp_forward.1} parent=11 // pred_fallthru
        _
      // Predicated region
      $region25: #{mlp_forward.1} parent=11 // pred_check
        %p279 = pneg %p141
      $region26: #{mlp_forward.1} parent=11 // pred_check_branch
        %281 = sbr.rel (%p279) target = $region28
      $region27: #{mlp_forward.1} parent=11 // pred_region
        _
      $region28: #{mlp_forward.1} parent=11 // pred_fallthru
        _
      // Predicated region
      $region29: #{mlp_forward.1} parent=11 // pred_check
        %p282 = pneg %p162
      $region30: #{mlp_forward.1} parent=11 // pred_check_branch
        %284 = sbr.rel (%p282) target = $region32
      $region31: #{mlp_forward.1} parent=11 // pred_region
        _
      $region32: #{mlp_forward.1} parent=11 // pred_fallthru
        _
      // Predicated region
      $region33: #{mlp_forward.1} parent=11 // pred_check
        %p285 = pneg %p183
      $region34: #{mlp_forward.1} parent=11 // pred_check_branch
        %287 = sbr.rel (%p285) target = $region36
      $region35: #{mlp_forward.1} parent=11 // pred_region
        _
      $region36: #{mlp_forward.1} parent=11 // pred_fallthru
        _
      // Predicated region
      $region37: #{mlp_forward.1} parent=11 // pred_check
        %p288 = pneg %p204
      $region38: #{mlp_forward.1} parent=11 // pred_check_branch
        %290 = sbr.rel (%p288) target = $region40
      $region39: #{mlp_forward.1} parent=11 // pred_region
        _
      $region40: #{mlp_forward.1} parent=11 // pred_fallthru
        _
      // Predicated region
      $region41: #{mlp_forward.1} parent=11 // pred_check
        %p291 = pneg %p225
      $region42: #{mlp_forward.1} parent=11 // pred_check_branch
        %293 = sbr.rel (%p291) target = $region44
      $region43: #{mlp_forward.1} parent=11 // pred_region
        _
      $region44: #{mlp_forward.1} parent=11 // pred_fallthru
        _
    $region12: #{mlp_forward.1} parent=5 // pred_fallthru
      _
    %p294 = scmp.lt.s32.totalorder %s15, 9
    // Predicated region
    $region45: #{mlp_forward.1} parent=5 // pred_check
      %p295 = pneg %p294
    $region46: #{mlp_forward.1} parent=5 // pred_check_branch
      %297 = sbr.rel (%p295) target = $region48
    $region47: #{mlp_forward.1} parent=5 // pred_region
      // Predicated region
      $region49: #{mlp_forward.1} parent=47 // pred_check
        %p298 = pneg %p51
      $region50: #{mlp_forward.1} parent=47 // pred_check_branch
        %300 = sbr.rel (%p298) target = $region52
      $region51: #{mlp_forward.1} parent=47 // pred_region
        %p301 = scmp.eq.s32.totalorder %s22, 0
        %s302 = scalar_select %p301, %s23, 2
        %s303 = smul.u32 32, %s302
        %p304 = scmp.lt.s32.totalorder %s303, 95
        %s305 = scalar_select %p304, %s303, 95
        %s306 = smul.addr %s305, 4
        %s307 = scalar_lea.vmem %s0, %s306
        %p308 = scmp.eq.s32.totalorder %s22, 0
        %s309 = scalar_select %p308, %s23, 2
        %s310 = smul.u32 32, %s309
      $region52: #{mlp_forward.1} parent=47 // pred_fallthru
        _
    $region48: #{mlp_forward.1} parent=5 // pred_fallthru
      _
    %p311 = scmp.le.s32.totalorder 1, %s15
    %p312 = scmp.lt.s32.totalorder %s15, 10
    %p313 = pnand %p311, %p312
    %p314 = pneg %p313
    // Predicated region
    $region53: #{mlp_forward.1} parent=5 // pred_check
      _
    $region54: #{mlp_forward.1} parent=5 // pred_check_branch
      %316 = sbr.rel (%p313) target = $region56
    $region55: #{mlp_forward.1} parent=5 // pred_region
      %s317 = ssub.s32 %s15, 1
      %p318 = scmp.eq.s32.totalorder %s24, 0
      %s319 = scalar_select %p318, %s25, 2
      %s320 = smul.u32 32, %s319
      %p321 = scmp.lt.s32.totalorder %s320, 95
      %s322 = scalar_select %p321, %s320, 95
      %s323 = smul.addr %s322, 4
      %s324 = scalar_lea.vmem %s0, %s323
      %p325 = pneg %p57
      %p326 = pneg %p54
      %p327 = pneg %p78
      %p328 = pneg %p75
      %p329 = pneg %p99
      %p330 = pneg %p96
      %p331 = pneg %p120
      %p332 = pneg %p117
      %p333 = pneg %p141
      %p334 = pneg %p138
      %p335 = pneg %p162
      %p336 = pneg %p159
      %p337 = pneg %p183
      %p338 = pneg %p180
      %p339 = pneg %p204
      %p340 = pneg %p201
      %p341 = pneg %p225
      %p342 = pneg %p222
      %p343 = pneg %p255
      %p344 = pneg %p252
      %p345 = scmp.eq.s32.totalorder %s24, 2
      %s346 = scalar_select %p345, %s25, 0
      %s347 = smul.u32 32, %s346
      %p348 = scmp.lt.s32.totalorder %s347, 95
      %s349 = scalar_select %p348, %s347, 95
      %s350 = smul.addr %s349, 8
      %s351 = scalar_lea.vmem %s9, %s350
      %p352 = scmp.eq.s32.totalorder %s24, 0
      %s353 = scalar_select %p352, %s25, 2
      %s354 = smul.u32 32, %s353
      %p355 = scmp.lt.s32.totalorder %s354, 95
      %s356 = scalar_select %p355, %s354, 95
      %s357 = smul.addr %s356, 4
      %s358 = scalar_lea.vmem %s0, %s357
      %p359 = scmp.eq.s32.totalorder %s24, 0
      %s360 = scalar_select %p359, %s25, 2
      %s361 = smul.u32 32, %s360
      %p362 = scmp.eq.s32.totalorder %s24, 2
      %s363 = scalar_select %p362, %s25, 0
      %s364 = smul.u32 32, %s363
      %p365 = scmp.lt.s32.totalorder %s364, 95
      %s366 = scalar_select %p365, %s364, 95
      %s367 = smul.addr %s366, 8
      %s368 = scalar_lea.vmem %s9, %s367
      %p369 = scmp.eq.s32.totalorder %s24, 2
      %s370 = scalar_select %p369, %s25, 0
      %s371 = smul.u32 32, %s370
      %p373 = scmp.eq.s32.totalorder %s25, 0
      // Predicated region
      $region57: #{mlp_forward.1} parent=55 // pred_check
        %p374 = pneg %p373
      $region58: #{mlp_forward.1} parent=55 // pred_check_branch
        %376 = sbr.rel (%p374) target = $region60
      $region59: #{mlp_forward.1} parent=55 // pred_region
        %p377 = scmp.gt.s32.totalorder %s24, 0
        // Predicated region
        $region61: #{mlp_forward.1} parent=59 // pred_check
          %p378 = pneg %p377
        $region62: #{mlp_forward.1} parent=59 // pred_check_branch
          %380 = sbr.rel (%p378) target = $region64
        $region63: #{mlp_forward.1} parent=59 // pred_region
          %v381 = vld [vmem:[#allocation3] sm:$0x1]
          %v382 = vmul.f32 %v381, 0.0016666667
          %v383 = vld [vmem:[#allocation4] sm:$0x1]
          %v384 = vmul.f32 %v383, 0.0016666667
          %v385 = vmul.f32 %v382, %v382
          %v386 = vsub.f32 %v384, %v385
          %v387 = vmax.f32 %v386, 0.0
          %v388 = vadd.f32 %v387, 1e-05
          %v389 = vrsqrt.pop %v388
          %s390 = ssub.s32 %s24, 1
          %s391 = scalar_lea.vmem %s7, %s390
          %v392 = vld [vmem:[%s391] sm:$0x1]
          %v393 = vmul.f32 %v392, %v389
          %s394 = scalar_lea.vmem %s8, %s390
          %v395 = vld [vmem:[%s394] sm:$0x1]
          %v396 = vmul.f32 %v382, %v393
          %v397 = vsub.f32 %v395, %v396
          %v398 = vlaneseq
          %v399 = vshrl.u32 %v398, 7
          %v400 = vadd.s32 %v399, 8
          %v401 = vadd.s32 %v399, 16
          %v402 = vadd.s32 %v399, 24
          %v403 = vadd.s32 %v399, 32
          %v404 = vadd.s32 %v399, 40
          %v405 = vadd.s32 %v399, 48
          %v406 = vadd.s32 %v399, 56
          %v407 = vadd.s32 %v399, 64
          %v408 = vadd.s32 %v399, 72
          %v409 = vadd.s32 %v399, 80
          %v410 = vadd.s32 %v399, 88
          %v411 = vadd.s32 %v399, 96
          %v412 = vadd.s32 %v399, 104
          %v413 = vadd.s32 %v399, 112
          %v414 = vadd.s32 %v399, 120
          %v415 = vlaneseq
          %v416 = vand.u32 %v415, 127
          %vm417 = vcmp.eq.s32.totalorder %v399, %v416
          %vm418 = vcmp.eq.s32.totalorder %v400, %v416
          %vm419 = vcmp.eq.s32.totalorder %v401, %v416
          %vm420 = vcmp.eq.s32.totalorder %v402, %v416
          %vm421 = vcmp.eq.s32.totalorder %v403, %v416
          %vm422 = vcmp.eq.s32.totalorder %v404, %v416
          %vm423 = vcmp.eq.s32.totalorder %v405, %v416
          %vm424 = vcmp.eq.s32.totalorder %v406, %v416
          %vm425 = vcmp.eq.s32.totalorder %v407, %v416
          %vm426 = vcmp.eq.s32.totalorder %v408, %v416
          %vm427 = vcmp.eq.s32.totalorder %v409, %v416
          %vm428 = vcmp.eq.s32.totalorder %v410, %v416
          %vm429 = vcmp.eq.s32.totalorder %v411, %v416
          %vm430 = vcmp.eq.s32.totalorder %v412, %v416
          %vm431 = vcmp.eq.s32.totalorder %v413, %v416
          %vm432 = vcmp.eq.s32.totalorder %v414, %v416
          %v434 = vlaneseq
          %v435 = vshrl.u32 %v434, 7
          %v436 = vsub.s32 0, %v435
          %v437 = vrot.slane %v393, %v436
          %v439 = vsel %vm417, %v437, 0.0
          %v440 = vsel %vm418, %v437, 0.0
          %v441 = vsel %vm419, %v437, 0.0
          %v442 = vsel %vm420, %v437, 0.0
          %v443 = vsel %vm421, %v437, 0.0
          %v444 = vsel %vm422, %v437, 0.0
          %v445 = vsel %vm423, %v437, 0.0
          %v446 = vsel %vm424, %v437, 0.0
          %v447 = vsel %vm425, %v437, 0.0
          %v448 = vsel %vm426, %v437, 0.0
          %v449 = vsel %vm427, %v437, 0.0
          %v450 = vsel %vm428, %v437, 0.0
          %v451 = vsel %vm429, %v437, 0.0
          %v452 = vsel %vm430, %v437, 0.0
          %v453 = vsel %vm431, %v437, 0.0
          %v454 = vsel %vm432, %v437, 0.0
          %v456 = vlaneseq
          %v457 = vshrl.u32 %v456, 7
          %v458 = vsub.s32 0, %v457
          %v459 = vrot.slane %v397, %v458
          %p461 = scmp.lt.s32.totalorder %s24, 2
          // Predicated region
          $region65: #{mlp_forward.1} parent=63 // pred_check
            %p462 = pneg %p461
          $region66: #{mlp_forward.1} parent=63 // pred_check_branch
            %464 = sbr.rel (%p462) target = $region68
          $region67: #{mlp_forward.1} parent=63 // pred_region
            %s465 = smul.u32 %s390, 16
            %s466 = smul.addr %s465, 4
            %s467 = scalar_lea.vmem %s3, %s466
            %v468 = vld [vmem:[%s467] sm:$0xf]
            %v469 = vld [vmem:[%s467 + $0x4] sm:$0xf]
            %v470 = vld [vmem:[%s467 + $0x8] sm:$0xf]
            %v471 = vld [vmem:[%s467 + $0xc] sm:$0xf]
            %v472 = vld [vmem:[%s467 + $0x10] sm:$0xf]
            %v473 = vld [vmem:[%s467 + $0x14] sm:$0xf]
            %v474 = vld [vmem:[%s467 + $0x18] sm:$0xf]
            %v475 = vld [vmem:[%s467 + $0x1c] sm:$0xf]
            %v476 = vld [vmem:[%s467 + $0x20] sm:$0xf]
            %v477 = vld [vmem:[%s467 + $0x24] sm:$0xf]
            %v478 = vld [vmem:[%s467 + $0x28] sm:$0xf]
            %v479 = vld [vmem:[%s467 + $0x2c] sm:$0xf]
            %v480 = vld [vmem:[%s467 + $0x30] sm:$0xf]
            %v481 = vld [vmem:[%s467 + $0x34] sm:$0xf]
            %v482 = vld [vmem:[%s467 + $0x38] sm:$0xf]
            %v483 = vld [vmem:[%s467 + $0x3c] sm:$0xf]
            %v484 = vunpack.c.l.bf16 %v468
            %v485 = vunpack.c.l.bf16 %v469
            %v486 = vunpack.c.l.bf16 %v470
            %v487 = vunpack.c.l.bf16 %v471
            %v488 = vunpack.c.l.bf16 %v472
            %v489 = vunpack.c.l.bf16 %v473
            %v490 = vunpack.c.l.bf16 %v474
            %v491 = vunpack.c.l.bf16 %v475
            %v492 = vunpack.c.l.bf16 %v476
            %v493 = vunpack.c.l.bf16 %v477
            %v494 = vunpack.c.l.bf16 %v478
            %v495 = vunpack.c.l.bf16 %v479
            %v496 = vunpack.c.l.bf16 %v480
            %v497 = vunpack.c.l.bf16 %v481
            %v498 = vunpack.c.l.bf16 %v482
            %v499 = vunpack.c.l.bf16 %v483
            %500 = vmatprep.subr.mxu0 0.0
            %501 = vmatpush1.msra.mxu0 %v484
            %502 = vmatprep.subr.mxu0 0.0
            %503 = vmatpush1.msra.mxu0 %v485
            %504 = vmatprep.subr.mxu0 0.0
            %505 = vmatpush1.msra.mxu0 %v486
            %506 = vmatprep.subr.mxu0 0.0
            %507 = vmatpush1.msra.mxu0 %v487
            %508 = vmatprep.subr.mxu0 0.0
            %509 = vmatpush1.msra.mxu0 %v488
            %510 = vmatprep.subr.mxu0 0.0
            %511 = vmatpush1.msra.mxu0 %v489
            %512 = vmatprep.subr.mxu0 0.0
            %513 = vmatpush1.msra.mxu0 %v490
            %514 = vmatprep.subr.mxu0 0.0
            %515 = vmatpush1.msra.mxu0 %v491
            %516 = vmatprep.subr.mxu0 0.0
            %517 = vmatpush1.msra.mxu0 %v492
            %518 = vmatprep.subr.mxu0 0.0
            %519 = vmatpush1.msra.mxu0 %v493
            %520 = vmatprep.subr.mxu0 0.0
            %521 = vmatpush1.msra.mxu0 %v494
            %522 = vmatprep.subr.mxu0 0.0
            %523 = vmatpush1.msra.mxu0 %v495
            %524 = vmatprep.subr.mxu0 0.0
            %525 = vmatpush1.msra.mxu0 %v496
            %526 = vmatprep.subr.mxu0 0.0
            %527 = vmatpush1.msra.mxu0 %v497
            %528 = vmatprep.subr.mxu0 0.0
            %529 = vmatpush1.msra.mxu0 %v498
            %530 = vmatprep.subr.mxu0 0.0
            %531 = vmatpush1.msra.mxu0 %v499
            %532 = vmatprep.subr.mxu0 0.0
            %533 = vmatpush1.msra.mxu0 0.0
            %534 = vmatprep.subr.mxu0 0.0
            %535 = vmatpush1.msra.mxu0 0.0
            %536 = vmatprep.subr.mxu0 0.0
            %537 = vmatpush1.msra.mxu0 0.0
            %538 = vmatprep.subr.mxu0 0.0
            %539 = vmatpush1.msra.mxu0 0.0
            %540 = vmatprep.subr.mxu0 0.0
            %541 = vmatpush1.msra.mxu0 0.0
            %542 = vmatprep.subr.mxu0 0.0
            %543 = vmatpush1.msra.mxu0 0.0
            %544 = vmatprep.subr.mxu0 0.0
            %545 = vmatpush1.msra.mxu0 0.0
            %546 = vmatprep.subr.mxu0 0.0
            %547 = vmatpush1.msra.mxu0 0.0
            %548 = vmatprep.subr.mxu0 0.0
            %549 = vmatpush1.msra.mxu0 0.0
            %550 = vmatprep.subr.mxu0 0.0
            %551 = vmatpush1.msra.mxu0 0.0
            %552 = vmatprep.subr.mxu0 0.0
            %553 = vmatpush1.msra.mxu0 0.0
            %554 = vmatprep.subr.mxu0 0.0
            %555 = vmatpush1.msra.mxu0 0.0
            %556 = vmatprep.subr.mxu0 0.0
            %557 = vmatpush1.msra.mxu0 0.0
            %558 = vmatprep.subr.mxu0 0.0
            %559 = vmatpush1.msra.mxu0 0.0
            %560 = vmatprep.subr.mxu0 0.0
            %561 = vmatpush1.msra.mxu0 0.0
            %562 = vmatprep.subr.mxu0 0.0
            %563 = vmatpush1.msra.mxu0 0.0
            %564 = vmatprep.mubr.f32.mxu0 0.0
            %565 = vmatmul.mubr.f32.gmra.mrb[0].mxu0 %v439
            %v566 = vpop.f32.mrb[0].mxu0
            %v567 = vadd.f32 0.0, %v566
            %v568 = vpop.f32.mrb[0].mxu0
            %569 = vmatprep.mubr.f32.mxu0 0.0
            %570 = vmatmul.mubr.f32.gmra.mrb[0].mxu0 %v440
            %v571 = vpop.f32.mrb[0].mxu0
            %v572 = vadd.f32 0.0, %v571
            %v573 = vpop.f32.mrb[0].mxu0
            %574 = vmatprep.mubr.f32.mxu0 0.0
            %575 = vmatmul.mubr.f32.gmra.mrb[0].mxu0 %v441
            %v576 = vpop.f32.mrb[0].mxu0
            %v577 = vadd.f32 0.0, %v576
            %v578 = vpop.f32.mrb[0].mxu0
            %579 = vmatprep.mubr.f32.mxu0 0.0
            %580 = vmatmul.mubr.f32.gmra.mrb[0].mxu0 %v442
            %v581 = vpop.f32.mrb[0].mxu0
            %v582 = vadd.f32 0.0, %v581
            %v583 = vpop.f32.mrb[0].mxu0
            %584 = vmatprep.mubr.f32.mxu0 0.0
            %585 = vmatmul.mubr.f32.gmra.mrb[0].mxu0 %v443
            %v586 = vpop.f32.mrb[0].mxu0
            %v587 = vadd.f32 0.0, %v586
            %v588 = vpop.f32.mrb[0].mxu0
            %589 = vmatprep.mubr.f32.mxu0 0.0
            %590 = vmatmul.mubr.f32.gmra.mrb[0].mxu0 %v444
            %v591 = vpop.f32.mrb[0].mxu0
            %v592 = vadd.f32 0.0, %v591
            %v593 = vpop.f32.mrb[0].mxu0
            %594 = vmatprep.mubr.f32.mxu0 0.0
            %595 = vmatmul.mubr.f32.gmra.mrb[0].mxu0 %v445
            %v596 = vpop.f32.mrb[0].mxu0
            %v597 = vadd.f32 0.0, %v596
            %v598 = vpop.f32.mrb[0].mxu0
            %599 = vmatprep.mubr.f32.mxu0 0.0
            %600 = vmatmul.mubr.f32.gmra.mrb[0].mxu0 %v446
            %v601 = vpop.f32.mrb[0].mxu0
            %v602 = vadd.f32 0.0, %v601
            %v603 = vpop.f32.mrb[0].mxu0
            %604 = vmatprep.mubr.f32.mxu0 0.0
            %605 = vmatmul.mubr.f32.gmra.mrb[0].mxu0 %v447
            %v606 = vpop.f32.mrb[0].mxu0
            %v607 = vadd.f32 0.0, %v606
            %v608 = vpop.f32.mrb[0].mxu0
            %609 = vmatprep.mubr.f32.mxu0 0.0
            %610 = vmatmul.mubr.f32.gmra.mrb[0].mxu0 %v448
            %v611 = vpop.f32.mrb[0].mxu0
            %v612 = vadd.f32 0.0, %v611
            %v613 = vpop.f32.mrb[0].mxu0
            %614 = vmatprep.mubr.f32.mxu0 0.0
            %615 = vmatmul.mubr.f32.gmra.mrb[0].mxu0 %v449
            %v616 = vpop.f32.mrb[0].mxu0
            %v617 = vadd.f32 0.0, %v616
            %v618 = vpop.f32.mrb[0].mxu0
            %619 = vmatprep.mubr.f32.mxu0 0.0
            %620 = vmatmul.mubr.f32.gmra.mrb[0].mxu0 %v450
            %v621 = vpop.f32.mrb[0].mxu0
            %v622 = vadd.f32 0.0, %v621
            %v623 = vpop.f32.mrb[0].mxu0
            %624 = vmatprep.mubr.f32.mxu0 0.0
            %625 = vmatmul.mubr.f32.gmra.mrb[0].mxu0 %v451
            %v626 = vpop.f32.mrb[0].mxu0
            %v627 = vadd.f32 0.0, %v626
            %v628 = vpop.f32.mrb[0].mxu0
            %629 = vmatprep.mubr.f32.mxu0 0.0
            %630 = vmatmul.mubr.f32.gmra.mrb[0].mxu0 %v452
            %v631 = vpop.f32.mrb[0].mxu0
            %v632 = vadd.f32 0.0, %v631
            %v633 = vpop.f32.mrb[0].mxu0
            %634 = vmatprep.mubr.f32.mxu0 0.0
            %635 = vmatmul.mubr.f32.gmra.mrb[0].mxu0 %v453
            %v636 = vpop.f32.mrb[0].mxu0
            %v637 = vadd.f32 0.0, %v636
            %v638 = vpop.f32.mrb[0].mxu0
            %639 = vmatprep.mubr.f32.mxu0 0.0
            %640 = vmatmul.mubr.f32.gmra.mrb[0].mxu0 %v454
            %v641 = vpop.f32.mrb[0].mxu0
            %v642 = vadd.f32 0.0, %v641
            %v643 = vpop.f32.mrb[0].mxu0
            %644 = vdwg.mxu0
            %v645 = vpack.c.bf16 %v572, %v567
            %v646 = vpack.c.bf16 %v582, %v577
            %v647 = vpack.c.bf16 %v592, %v587
            %v648 = vpack.c.bf16 %v602, %v597
            %v649 = vpack.c.bf16 %v612, %v607
            %v650 = vpack.c.bf16 %v622, %v617
            %v651 = vpack.c.bf16 %v632, %v627
            %v652 = vpack.c.bf16 %v642, %v637
            %653 = vst [vmem:[#allocation5] sm:$0xff] %v645
            %654 = vst [vmem:[#allocation5 + $0x8] sm:$0xff] %v646
            %655 = vst [vmem:[#allocation5 + $0x10] sm:$0xff] %v647
            %656 = vst [vmem:[#allocation5 + $0x18] sm:$0xff] %v648
            %657 = vst [vmem:[#allocation5 + $0x20] sm:$0xff] %v649
            %658 = vst [vmem:[#allocation5 + $0x28] sm:$0xff] %v650
            %659 = vst [vmem:[#allocation5 + $0x30] sm:$0xff] %v651
            %660 = vst [vmem:[#allocation5 + $0x38] sm:$0xff] %v652
            %s661 = scalar_lea.vmem %s4, %s390
            %v662 = vld [vmem:[%s661] sm:$0x1]
            %663 = vmatprep.subr.mxu0 0.0
            %664 = vmatpush1.msra.mxu0 %v484
            %665 = vmatprep.subr.mxu0 0.0
            %666 = vmatpush1.msra.mxu0 %v485
            %667 = vmatprep.subr.mxu0 0.0
            %668 = vmatpush1.msra.mxu0 %v486
            %669 = vmatprep.subr.mxu0 0.0
            %670 = vmatpush1.msra.mxu0 %v487
            %671 = vmatprep.subr.mxu0 0.0
            %672 = vmatpush1.msra.mxu0 %v488
            %673 = vmatprep.subr.mxu0 0.0
            %674 = vmatpush1.msra.mxu0 %v489
            %675 = vmatprep.subr.mxu0 0.0
            %676 = vmatpush1.msra.mxu0 %v490
            %677 = vmatprep.subr.mxu0 0.0
            %678 = vmatpush1.msra.mxu0 %v491
            %679 = vmatprep.subr.mxu0 0.0
            %680 = vmatpush1.msra.mxu0 %v492
            %681 = vmatprep.subr.mxu0 0.0
            %682 = vmatpush1.msra.mxu0 %v493
            %683 = vmatprep.subr.mxu0 0.0
            %684 = vmatpush1.msra.mxu0 %v494
            %685 = vmatprep.subr.mxu0 0.0
            %686 = vmatpush1.msra.mxu0 %v495
            %687 = vmatprep.subr.mxu0 0.0
            %688 = vmatpush1.msra.mxu0 %v496
            %689 = vmatprep.subr.mxu0 0.0
            %690 = vmatpush1.msra.mxu0 %v497
            %691 = vmatprep.subr.mxu0 0.0
            %692 = vmatpush1.msra.mxu0 %v498
            %693 = vmatprep.subr.mxu0 0.0
            %694 = vmatpush1.msra.mxu0 %v499
            %695 = vmatprep.subr.mxu0 0.0
            %696 = vmatpush1.msra.mxu0 0.0
            %697 = vmatprep.subr.mxu0 0.0
            %698 = vmatpush1.msra.mxu0 0.0
            %699 = vmatprep.subr.mxu0 0.0
            %700 = vmatpush1.msra.mxu0 0.0
            %701 = vmatprep.subr.mxu0 0.0
            %702 = vmatpush1.msra.mxu0 0.0
            %703 = vmatprep.subr.mxu0 0.0
            %704 = vmatpush1.msra.mxu0 0.0
            %705 = vmatprep.subr.mxu0 0.0
            %706 = vmatpush1.msra.mxu0 0.0
            %707 = vmatprep.subr.mxu0 0.0
            %708 = vmatpush1.msra.mxu0 0.0
            %709 = vmatprep.subr.mxu0 0.0
            %710 = vmatpush1.msra.mxu0 0.0
            %711 = vmatprep.subr.mxu0 0.0
            %712 = vmatpush1.msra.mxu0 0.0
            %713 = vmatprep.subr.mxu0 0.0
            %714 = vmatpush1.msra.mxu0 0.0
            %715 = vmatprep.subr.mxu0 0.0
            %716 = vmatpush1.msra.mxu0 0.0
            %717 = vmatprep.subr.mxu0 0.0
            %718 = vmatpush1.msra.mxu0 0.0
            %719 = vmatprep.subr.mxu0 0.0
            %720 = vmatpush1.msra.mxu0 0.0
            %721 = vmatprep.subr.mxu0 0.0
            %722 = vmatpush1.msra.mxu0 0.0
            %723 = vmatprep.subr.mxu0 0.0
            %724 = vmatpush1.msra.mxu0 0.0
            %725 = vmatprep.subr.mxu0 0.0
            %726 = vmatpush1.msra.mxu0 0.0
            %727 = vmatprep.mubr.f32.mxu0 0.0
            %728 = vmatmul.mubr.f32.gmra.mrb[0].mxu0 %v459
            %v729 = vpop.f32.mrb[0].mxu0
            %v730 = vadd.f32 0.0, %v729
            %v731 = vpop.f32.mrb[0].mxu0
            %732 = vdwg.mxu0
            %v733 = vadd.f32 %v662, %v730
            %734 = vst [vmem:[#allocation6] sm:$0x1] %v733
          $region68: #{mlp_forward.1} parent=63 // pred_fallthru
            _
          %p735 = scmp.eq.s32.totalorder %s24, 2
          // Predicated region
          $region69: #{mlp_forward.1} parent=63 // pred_check
            %p736 = pneg %p735
          $region70: #{mlp_forward.1} parent=63 // pred_check_branch
            %738 = sbr.rel (%p736) target = $region72
          $region71: #{mlp_forward.1} parent=63 // pred_region
            %v739 = vld [vmem:[%s5] sm:$0xf]
            %v740 = vld [vmem:[%s5 + $0x4] sm:$0xf]
            %v741 = vld [vmem:[%s5 + $0x8] sm:$0xf]
            %v742 = vld [vmem:[%s5 + $0xc] sm:$0xf]
            %v743 = vld [vmem:[%s5 + $0x10] sm:$0xf]
            %v744 = vld [vmem:[%s5 + $0x14] sm:$0xf]
            %v745 = vld [vmem:[%s5 + $0x18] sm:$0xf]
            %v746 = vld [vmem:[%s5 + $0x1c] sm:$0xf]
            %v747 = vld [vmem:[%s5 + $0x20] sm:$0xf]
            %v748 = vld [vmem:[%s5 + $0x24] sm:$0xf]
            %v749 = vld [vmem:[%s5 + $0x28] sm:$0xf]
            %v750 = vld [vmem:[%s5 + $0x2c] sm:$0xf]
            %v751 = vld [vmem:[%s5 + $0x30] sm:$0xf]
            %v752 = vld [vmem:[%s5 + $0x34] sm:$0xf]
            %v753 = vld [vmem:[%s5 + $0x38] sm:$0xf]
            %v754 = vld [vmem:[%s5 + $0x3c] sm:$0xf]
            %v755 = vunpack.c.l.bf16 %v739
            %v756 = vunpack.c.l.bf16 %v740
            %v757 = vunpack.c.l.bf16 %v741
            %v758 = vunpack.c.l.bf16 %v742
            %v759 = vunpack.c.l.bf16 %v743
            %v760 = vunpack.c.l.bf16 %v744
            %v761 = vunpack.c.l.bf16 %v745
            %v762 = vunpack.c.l.bf16 %v746
            %v763 = vunpack.c.l.bf16 %v747
            %v764 = vunpack.c.l.bf16 %v748
            %v765 = vunpack.c.l.bf16 %v749
            %v766 = vunpack.c.l.bf16 %v750
            %v767 = vunpack.c.l.bf16 %v751
            %v768 = vunpack.c.l.bf16 %v752
            %v769 = vunpack.c.l.bf16 %v753
            %v770 = vunpack.c.l.bf16 %v754
            %771 = vmatprep.subr.mxu0 0.0
            %772 = vmatpush1.msra.mxu0 %v755
            %773 = vmatprep.subr.mxu0 0.0
            %774 = vmatpush1.msra.mxu0 %v756
            %775 = vmatprep.subr.mxu0 0.0
            %776 = vmatpush1.msra.mxu0 %v757
            %777 = vmatprep.subr.mxu0 0.0
            %778 = vmatpush1.msra.mxu0 %v758
            %779 = vmatprep.subr.mxu0 0.0
            %780 = vmatpush1.msra.mxu0 %v759
            %781 = vmatprep.subr.mxu0 0.0
            %782 = vmatpush1.msra.mxu0 %v760
            %783 = vmatprep.subr.mxu0 0.0
            %784 = vmatpush1.msra.mxu0 %v761
            %785 = vmatprep.subr.mxu0 0.0
            %786 = vmatpush1.msra.mxu0 %v762
            %787 = vmatprep.subr.mxu0 0.0
            %788 = vmatpush1.msra.mxu0 %v763
            %789 = vmatprep.subr.mxu0 0.0
            %790 = vmatpush1.msra.mxu0 %v764
            %791 = vmatprep.subr.mxu0 0.0
            %792 = vmatpush1.msra.mxu0 %v765
            %793 = vmatprep.subr.mxu0 0.0
            %794 = vmatpush1.msra.mxu0 %v766
            %795 = vmatprep.subr.mxu0 0.0
            %796 = vmatpush1.msra.mxu0 %v767
            %797 = vmatprep.subr.mxu0 0.0
            %798 = vmatpush1.msra.mxu0 %v768
            %799 = vmatprep.subr.mxu0 0.0
            %800 = vmatpush1.msra.mxu0 %v769
            %801 = vmatprep.subr.mxu0 0.0
            %802 = vmatpush1.msra.mxu0 %v770
            %803 = vmatprep.subr.mxu0 0.0
            %804 = vmatpush1.msra.mxu0 0.0
            %805 = vmatprep.subr.mxu0 0.0
            %806 = vmatpush1.msra.mxu0 0.0
            %807 = vmatprep.subr.mxu0 0.0
            %808 = vmatpush1.msra.mxu0 0.0
            %809 = vmatprep.subr.mxu0 0.0
            %810 = vmatpush1.msra.mxu0 0.0
            %811 = vmatprep.subr.mxu0 0.0
            %812 = vmatpush1.msra.mxu0 0.0
            %813 = vmatprep.subr.mxu0 0.0
            %814 = vmatpush1.msra.mxu0 0.0
            %815 = vmatprep.subr.mxu0 0.0
            %816 = vmatpush1.msra.mxu0 0.0
            %817 = vmatprep.subr.mxu0 0.0
            %818 = vmatpush1.msra.mxu0 0.0
            %819 = vmatprep.subr.mxu0 0.0
            %820 = vmatpush1.msra.mxu0 0.0
            %821 = vmatprep.subr.mxu0 0.0
            %822 = vmatpush1.msra.mxu0 0.0
            %823 = vmatprep.subr.mxu0 0.0
            %824 = vmatpush1.msra.mxu0 0.0
            %825 = vmatprep.subr.mxu0 0.0
            %826 = vmatpush1.msra.mxu0 0.0
            %827 = vmatprep.subr.mxu0 0.0
            %828 = vmatpush1.msra.mxu0 0.0
            %829 = vmatprep.subr.mxu0 0.0
            %830 = vmatpush1.msra.mxu0 0.0
            %831 = vmatprep.subr.mxu0 0.0
            %832 = vmatpush1.msra.mxu0 0.0
            %833 = vmatprep.subr.mxu0 0.0
            %834 = vmatpush1.msra.mxu0 0.0
            %835 = vmatprep.mubr.f32.mxu0 0.0
            %836 = vmatmul.mubr.f32.gmra.mrb[0].mxu0 %v439
            %v837 = vpop.f32.mrb[0].mxu0
            %v838 = vadd.f32 0.0, %v837
            %v839 = vpop.f32.mrb[0].mxu0
            %840 = vmatprep.mubr.f32.mxu0 0.0
            %841 = vmatmul.mubr.f32.gmra.mrb[0].mxu0 %v440
            %v842 = vpop.f32.mrb[0].mxu0
            %v843 = vadd.f32 0.0, %v842
            %v844 = vpop.f32.mrb[0].mxu0
            %845 = vmatprep.mubr.f32.mxu0 0.0
            %846 = vmatmul.mubr.f32.gmra.mrb[0].mxu0 %v441
            %v847 = vpop.f32.mrb[0].mxu0
            %v848 = vadd.f32 0.0, %v847
            %v849 = vpop.f32.mrb[0].mxu0
            %850 = vmatprep.mubr.f32.mxu0 0.0
            %851 = vmatmul.mubr.f32.gmra.mrb[0].mxu0 %v442
            %v852 = vpop.f32.mrb[0].mxu0
            %v853 = vadd.f32 0.0, %v852
            %v854 = vpop.f32.mrb[0].mxu0
            %855 = vmatprep.mubr.f32.mxu0 0.0
            %856 = vmatmul.mubr.f32.gmra.mrb[0].mxu0 %v443
            %v857 = vpop.f32.mrb[0].mxu0
            %v858 = vadd.f32 0.0, %v857
            %v859 = vpop.f32.mrb[0].mxu0
            %860 = vmatprep.mubr.f32.mxu0 0.0
            %861 = vmatmul.mubr.f32.gmra.mrb[0].mxu0 %v444
            %v862 = vpop.f32.mrb[0].mxu0
            %v863 = vadd.f32 0.0, %v862
            %v864 = vpop.f32.mrb[0].mxu0
            %865 = vmatprep.mubr.f32.mxu0 0.0
            %866 = vmatmul.mubr.f32.gmra.mrb[0].mxu0 %v445
            %v867 = vpop.f32.mrb[0].mxu0
            %v868 = vadd.f32 0.0, %v867
            %v869 = vpop.f32.mrb[0].mxu0
            %870 = vmatprep.mubr.f32.mxu0 0.0
            %871 = vmatmul.mubr.f32.gmra.mrb[0].mxu0 %v446
            %v872 = vpop.f32.mrb[0].mxu0
            %v873 = vadd.f32 0.0, %v872
            %v874 = vpop.f32.mrb[0].mxu0
            %875 = vmatprep.mubr.f32.mxu0 0.0
            %876 = vmatmul.mubr.f32.gmra.mrb[0].mxu0 %v447
            %v877 = vpop.f32.mrb[0].mxu0
            %v878 = vadd.f32 0.0, %v877
            %v879 = vpop.f32.mrb[0].mxu0
            %880 = vmatprep.mubr.f32.mxu0 0.0
            %881 = vmatmul.mubr.f32.gmra.mrb[0].mxu0 %v448
            %v882 = vpop.f32.mrb[0].mxu0
            %v883 = vadd.f32 0.0, %v882
            %v884 = vpop.f32.mrb[0].mxu0
            %885 = vmatprep.mubr.f32.mxu0 0.0
            %886 = vmatmul.mubr.f32.gmra.mrb[0].mxu0 %v449
            %v887 = vpop.f32.mrb[0].mxu0
            %v888 = vadd.f32 0.0, %v887
            %v889 = vpop.f32.mrb[0].mxu0
            %890 = vmatprep.mubr.f32.mxu0 0.0
            %891 = vmatmul.mubr.f32.gmra.mrb[0].mxu0 %v450
            %v892 = vpop.f32.mrb[0].mxu0
            %v893 = vadd.f32 0.0, %v892
            %v894 = vpop.f32.mrb[0].mxu0
            %895 = vmatprep.mubr.f32.mxu0 0.0
            %896 = vmatmul.mubr.f32.gmra.mrb[0].mxu0 %v451
            %v897 = vpop.f32.mrb[0].mxu0
            %v898 = vadd.f32 0.0, %v897
            %v899 = vpop.f32.mrb[0].mxu0
            %900 = vmatprep.mubr.f32.mxu0 0.0
            %901 = vmatmul.mubr.f32.gmra.mrb[0].mxu0 %v452
            %v902 = vpop.f32.mrb[0].mxu0
            %v903 = vadd.f32 0.0, %v902
            %v904 = vpop.f32.mrb[0].mxu0
            %905 = vmatprep.mubr.f32.mxu0 0.0
            %906 = vmatmul.mubr.f32.gmra.mrb[0].mxu0 %v453
            %v907 = vpop.f32.mrb[0].mxu0
            %v908 = vadd.f32 0.0, %v907
            %v909 = vpop.f32.mrb[0].mxu0
            %910 = vmatprep.mubr.f32.mxu0 0.0
            %911 = vmatmul.mubr.f32.gmra.mrb[0].mxu0 %v454
            %v912 = vpop.f32.mrb[0].mxu0
            %v913 = vadd.f32 0.0, %v912
            %v914 = vpop.f32.mrb[0].mxu0
            %915 = vdwg.mxu0
            %v916 = vpack.c.bf16 %v843, %v838
            %v917 = vpack.c.bf16 %v853, %v848
            %v918 = vpack.c.bf16 %v863, %v858
            %v919 = vpack.c.bf16 %v873, %v868
            %v920 = vpack.c.bf16 %v883, %v878
            %v921 = vpack.c.bf16 %v893, %v888
            %v922 = vpack.c.bf16 %v903, %v898
            %v923 = vpack.c.bf16 %v913, %v908
            %924 = vst [vmem:[#allocation7] sm:$0xff] %v916
            %925 = vst [vmem:[#allocation7 + $0x8] sm:$0xff] %v917
            %926 = vst [vmem:[#allocation7 + $0x10] sm:$0xff] %v918
            %927 = vst [vmem:[#allocation7 + $0x18] sm:$0xff] %v919
            %928 = vst [vmem:[#allocation7 + $0x20] sm:$0xff] %v920
            %929 = vst [vmem:[#allocation7 + $0x28] sm:$0xff] %v921
            %930 = vst [vmem:[#allocation7 + $0x30] sm:$0xff] %v922
            %931 = vst [vmem:[#allocation7 + $0x38] sm:$0xff] %v923
            %v932 = vld [vmem:[%s6] sm:$0x1]
            %933 = vmatprep.subr.mxu0 0.0
            %934 = vmatpush1.msra.mxu0 %v755
            %935 = vmatprep.subr.mxu0 0.0
            %936 = vmatpush1.msra.mxu0 %v756
            %937 = vmatprep.subr.mxu0 0.0
            %938 = vmatpush1.msra.mxu0 %v757
            %939 = vmatprep.subr.mxu0 0.0
            %940 = vmatpush1.msra.mxu0 %v758
            %941 = vmatprep.subr.mxu0 0.0
            %942 = vmatpush1.msra.mxu0 %v759
            %943 = vmatprep.subr.mxu0 0.0
            %944 = vmatpush1.msra.mxu0 %v760
            %945 = vmatprep.subr.mxu0 0.0
            %946 = vmatpush1.msra.mxu0 %v761
            %947 = vmatprep.subr.mxu0 0.0
            %948 = vmatpush1.msra.mxu0 %v762
            %949 = vmatprep.subr.mxu0 0.0
            %950 = vmatpush1.msra.mxu0 %v763
            %951 = vmatprep.subr.mxu0 0.0
            %952 = vmatpush1.msra.mxu0 %v764
            %953 = vmatprep.subr.mxu0 0.0
            %954 = vmatpush1.msra.mxu0 %v765
            %955 = vmatprep.subr.mxu0 0.0
            %956 = vmatpush1.msra.mxu0 %v766
            %957 = vmatprep.subr.mxu0 0.0
            %958 = vmatpush1.msra.mxu0 %v767
            %959 = vmatprep.subr.mxu0 0.0
            %960 = vmatpush1.msra.mxu0 %v768
            %961 = vmatprep.subr.mxu0 0.0
            %962 = vmatpush1.msra.mxu0 %v769
            %963 = vmatprep.subr.mxu0 0.0
            %964 = vmatpush1.msra.mxu0 %v770
            %965 = vmatprep.subr.mxu0 0.0
            %966 = vmatpush1.msra.mxu0 0.0
            %967 = vmatprep.subr.mxu0 0.0
            %968 = vmatpush1.msra.mxu0 0.0
            %969 = vmatprep.subr.mxu0 0.0
            %970 = vmatpush1.msra.mxu0 0.0
            %971 = vmatprep.subr.mxu0 0.0
            %972 = vmatpush1.msra.mxu0 0.0
            %973 = vmatprep.subr.mxu0 0.0
            %974 = vmatpush1.msra.mxu0 0.0
            %975 = vmatprep.subr.mxu0 0.0
            %976 = vmatpush1.msra.mxu0 0.0
            %977 = vmatprep.subr.mxu0 0.0
            %978 = vmatpush1.msra.mxu0 0.0
            %979 = vmatprep.subr.mxu0 0.0
            %980 = vmatpush1.msra.mxu0 0.0
            %981 = vmatprep.subr.mxu0 0.0
            %982 = vmatpush1.msra.mxu0 0.0
            %983 = vmatprep.subr.mxu0 0.0
            %984 = vmatpush1.msra.mxu0 0.0
            %985 = vmatprep.subr.mxu0 0.0
            %986 = vmatpush1.msra.mxu0 0.0
            %987 = vmatprep.subr.mxu0 0.0
            %988 = vmatpush1.msra.mxu0 0.0
            %989 = vmatprep.subr.mxu0 0.0
            %990 = vmatpush1.msra.mxu0 0.0
            %991 = vmatprep.subr.mxu0 0.0
            %992 = vmatpush1.msra.mxu0 0.0
            %993 = vmatprep.subr.mxu0 0.0
            %994 = vmatpush1.msra.mxu0 0.0
            %995 = vmatprep.subr.mxu0 0.0
            %996 = vmatpush1.msra.mxu0 0.0
            %997 = vmatprep.mubr.f32.mxu0 0.0
            %998 = vmatmul.mubr.f32.gmra.mrb[0].mxu0 %v459
            %v999 = vpop.f32.mrb[0].mxu0
            %v1000 = vadd.f32 0.0, %v999
            %v1001 = vpop.f32.mrb[0].mxu0
            %1002 = vdwg.mxu0
            %v1003 = vadd.f32 %v932, %v1000
            %1004 = vst [vmem:[#allocation8] sm:$0x1] %v1003
          $region72: #{mlp_forward.1} parent=63 // pred_fallthru
            _
        $region64: #{mlp_forward.1} parent=59 // pred_fallthru
          _
        %p1005 = scmp.lt.s32.totalorder %s24, 2
        // Predicated region
        $region73: #{mlp_forward.1} parent=59 // pred_check
          %p1006 = pneg %p1005
        $region74: #{mlp_forward.1} parent=59 // pred_check_branch
          %1008 = sbr.rel (%p1006) target = $region76
        $region75: #{mlp_forward.1} parent=59 // pred_region
          %1009 = vst [vmem:[#allocation3] sm:$0x1] 0.0
          %1010 = vst [vmem:[#allocation4] sm:$0x1] 0.0
        $region76: #{mlp_forward.1} parent=59 // pred_fallthru
          _
      $region60: #{mlp_forward.1} parent=55 // pred_fallthru
        _
      %s1011 = smul.u32 %s25, 256
      %p1012 = scmp.eq.s32.totalorder %s24, 0
      // Predicated region
      $region77: #{mlp_forward.1} parent=55 // pred_check
        %p1013 = pneg %p1012
      $region78: #{mlp_forward.1} parent=55 // pred_check_branch
        %1015 = sbr.rel (%p1013) target = $region80
      $region79: #{mlp_forward.1} parent=55 // pred_region
        %v1016 = vld [vmem:[%s358] sm:$0xf]
        %v1017 = vld [vmem:[%s358 + $0x4] sm:$0xf]
        %v1018 = vld [vmem:[%s358 + $0x8] sm:$0xf]
        %v1019 = vld [vmem:[%s358 + $0xc] sm:$0xf]
        %v1020 = vld [vmem:[%s358 + $0x10] sm:$0xf]
        %v1021 = vld [vmem:[%s358 + $0x14] sm:$0xf]
        %v1022 = vld [vmem:[%s358 + $0x18] sm:$0xf]
        %v1023 = vld [vmem:[%s358 + $0x1c] sm:$0xf]
        %v1024 = vld [vmem:[%s358 + $0x20] sm:$0xf]
        %v1025 = vld [vmem:[%s358 + $0x24] sm:$0xf]
        %v1026 = vld [vmem:[%s358 + $0x28] sm:$0xf]
        %v1027 = vld [vmem:[%s358 + $0x2c] sm:$0xf]
        %v1028 = vld [vmem:[%s358 + $0x30] sm:$0xf]
        %v1029 = vld [vmem:[%s358 + $0x34] sm:$0xf]
        %v1030 = vld [vmem:[%s358 + $0x38] sm:$0xf]
        %v1031 = vld [vmem:[%s358 + $0x3c] sm:$0xf]
        %v1032 = vld [vmem:[%s358 + $0x40] sm:$0xf]
        %v1033 = vld [vmem:[%s358 + $0x44] sm:$0xf]
        %v1034 = vld [vmem:[%s358 + $0x48] sm:$0xf]
        %v1035 = vld [vmem:[%s358 + $0x4c] sm:$0xf]
        %v1036 = vld [vmem:[%s358 + $0x50] sm:$0xf]
        %v1037 = vld [vmem:[%s358 + $0x54] sm:$0xf]
        %v1038 = vld [vmem:[%s358 + $0x58] sm:$0xf]
        %v1039 = vld [vmem:[%s358 + $0x5c] sm:$0xf]
        %v1040 = vld [vmem:[%s358 + $0x60] sm:$0xf]
        %v1041 = vld [vmem:[%s358 + $0x64] sm:$0xf]
        %v1042 = vld [vmem:[%s358 + $0x68] sm:$0xf]
        %v1043 = vld [vmem:[%s358 + $0x6c] sm:$0xf]
        %v1044 = vld [vmem:[%s358 + $0x70] sm:$0xf]
        %v1045 = vld [vmem:[%s358 + $0x74] sm:$0xf]
        %v1046 = vld [vmem:[%s358 + $0x78] sm:$0xf]
        %v1047 = vld [vmem:[%s358 + $0x7c] sm:$0xf]
        %v1048 = vld [vmem:[%s1] sm:$0xf]
        %v1049 = vld [vmem:[%s1 + $0x4] sm:$0xf]
        %v1050 = vld [vmem:[%s1 + $0x8] sm:$0xf]
        %v1051 = vld [vmem:[%s1 + $0xc] sm:$0xf]
        %v1052 = vld [vmem:[%s1 + $0x10] sm:$0xf]
        %v1053 = vld [vmem:[%s1 + $0x14] sm:$0xf]
        %v1054 = vld [vmem:[%s1 + $0x18] sm:$0xf]
        %v1055 = vld [vmem:[%s1 + $0x1c] sm:$0xf]
        %v1056 = vld [vmem:[%s1 + $0x20] sm:$0xf]
        %v1057 = vld [vmem:[%s1 + $0x24] sm:$0xf]
        %v1058 = vld [vmem:[%s1 + $0x28] sm:$0xf]
        %v1059 = vld [vmem:[%s1 + $0x2c] sm:$0xf]
        %v1060 = vld [vmem:[%s1 + $0x30] sm:$0xf]
        %v1061 = vld [vmem:[%s1 + $0x34] sm:$0xf]
        %v1062 = vld [vmem:[%s1 + $0x38] sm:$0xf]
        %v1063 = vld [vmem:[%s1 + $0x3c] sm:$0xf]
        %v1064 = vld [vmem:[%s2] sm:$0x1]
        %v1066 = vlaneseq
        %v1067 = vshrl.u32 %v1066, 7
        %v1068 = vsub.s32 0, %v1067
        %v1069 = vrot.slane %v1064, %v1068
        %v1103 = vunpack.c.l.b16 %v1016
        %v1104 = vunpack.c.l.b16 %v1017
        %v1105 = vunpack.c.l.b16 %v1018
        %v1106 = vunpack.c.l.b16 %v1019
        %v1107 = vunpack.c.l.b16 %v1020
        %v1108 = vunpack.c.l.b16 %v1021
        %v1109 = vunpack.c.l.b16 %v1022
        %v1110 = vunpack.c.l.b16 %v1023
        %v1111 = vunpack.c.l.b16 %v1024
        %v1112 = vunpack.c.l.b16 %v1025
        %v1113 = vunpack.c.l.b16 %v1026
        %v1114 = vunpack.c.l.b16 %v1027
        %v1115 = vunpack.c.l.b16 %v1028
        %v1116 = vunpack.c.l.b16 %v1029
        %v1117 = vunpack.c.l.b16 %v1030
        %v1118 = vunpack.c.l.b16 %v1031
        %v1119 = vunpack.c.l.b16 %v1032
        %v1120 = vunpack.c.l.b16 %v1033
        %v1121 = vunpack.c.l.b16 %v1034
        %v1122 = vunpack.c.l.b16 %v1035
        %v1123 = vunpack.c.l.b16 %v1036
        %v1124 = vunpack.c.l.b16 %v1037
        %v1125 = vunpack.c.l.b16 %v1038
        %v1126 = vunpack.c.l.b16 %v1039
        %v1127 = vunpack.c.l.b16 %v1040
        %v1128 = vunpack.c.l.b16 %v1041
        %v1129 = vunpack.c.l.b16 %v1042
        %v1130 = vunpack.c.l.b16 %v1043
        %v1131 = vunpack.c.l.b16 %v1044
        %v1132 = vunpack.c.l.b16 %v1045
        %v1133 = vunpack.c.l.b16 %v1046
        %v1134 = vunpack.c.l.b16 %v1047
        %v1135 = vpack.c.b16 %v1104, %v1103
        %v1136 = vpack.c.b16 %v1106, %v1105
        %v1137 = vpack.c.b16 %v1108, %v1107
        %v1138 = vpack.c.b16 %v1110, %v1109
        %v1139 = vpack.c.b16 %v1112, %v1111
        %v1140 = vpack.c.b16 %v1114, %v1113
        %v1141 = vpack.c.b16 %v1116, %v1115
        %v1142 = vpack.c.b16 %v1118, %v1117
        %v1143 = vpack.c.b16 %v1120, %v1119
        %v1144 = vpack.c.b16 %v1122, %v1121
        %v1145 = vpack.c.b16 %v1124, %v1123
        %v1146 = vpack.c.b16 %v1126, %v1125
        %v1147 = vpack.c.b16 %v1128, %v1127
        %v1148 = vpack.c.b16 %v1130, %v1129
        %v1149 = vpack.c.b16 %v1132, %v1131
        %v1150 = vpack.c.b16 %v1134, %v1133
        %v1183 = vunpack.c.l.b16 %v1048
        %v1184 = vunpack.c.l.b16 %v1049
        %v1185 = vunpack.c.l.b16 %v1050
        %v1186 = vunpack.c.l.b16 %v1051
        %v1187 = vunpack.c.l.b16 %v1052
        %v1188 = vunpack.c.l.b16 %v1053
        %v1189 = vunpack.c.l.b16 %v1054
        %v1190 = vunpack.c.l.b16 %v1055
        %v1191 = vunpack.c.l.b16 %v1056
        %v1192 = vunpack.c.l.b16 %v1057
        %v1193 = vunpack.c.l.b16 %v1058
        %v1194 = vunpack.c.l.b16 %v1059
        %v1195 = vunpack.c.l.b16 %v1060
        %v1196 = vunpack.c.l.b16 %v1061
        %v1197 = vunpack.c.l.b16 %v1062
        %v1198 = vunpack.c.l.b16 %v1063
        %v1199 = vpack.c.b16 %v1184, %v1183
        %v1200 = vpack.c.b16 %v1186, %v1185
        %v1201 = vpack.c.b16 %v1188, %v1187
        %v1202 = vpack.c.b16 %v1190, %v1189
        %v1203 = vpack.c.b16 %v1192, %v1191
        %v1204 = vpack.c.b16 %v1194, %v1193
        %v1205 = vpack.c.b16 %v1196, %v1195
        %v1206 = vpack.c.b16 %v1198, %v1197
        %1215 = vmatprep.subr.bf16.mxu0 0
        %1216 = vmatpush1.bf16.msra.mxu0 %v1199
        %1217 = vmatprep.subr.bf16.mxu0 0
        %1218 = vmatpush1.bf16.msra.mxu0 %v1200
        %1219 = vmatprep.subr.bf16.mxu0 0
        %1220 = vmatpush1.bf16.msra.mxu0 %v1201
        %1221 = vmatprep.subr.bf16.mxu0 0
        %1222 = vmatpush1.bf16.msra.mxu0 %v1202
        %1223 = vmatprep.subr.bf16.mxu0 0
        %1224 = vmatpush1.bf16.msra.mxu0 %v1203
        %1225 = vmatprep.subr.bf16.mxu0 0
        %1226 = vmatpush1.bf16.msra.mxu0 %v1204
        %1227 = vmatprep.subr.bf16.mxu0 0
        %1228 = vmatpush1.bf16.msra.mxu0 %v1205
        %1229 = vmatprep.subr.bf16.mxu0 0
        %1230 = vmatpush1.bf16.msra.mxu0 %v1206
        %1231 = vmatprep.subr.bf16.mxu0 0
        %1232 = vmatpush1.bf16.msra.mxu0 0
        %1233 = vmatprep.subr.bf16.mxu0 0
        %1234 = vmatpush1.bf16.msra.mxu0 0
        %1235 = vmatprep.subr.bf16.mxu0 0
        %1236 = vmatpush1.bf16.msra.mxu0 0
        %1237 = vmatprep.subr.bf16.mxu0 0
        %1238 = vmatpush1.bf16.msra.mxu0 0
        %1239 = vmatprep.subr.bf16.mxu0 0
        %1240 = vmatpush1.bf16.msra.mxu0 0
        %1241 = vmatprep.subr.bf16.mxu0 0
        %1242 = vmatpush1.bf16.msra.mxu0 0
        %1243 = vmatprep.subr.bf16.mxu0 0
        %1244 = vmatpush1.bf16.msra.mxu0 0
        %1245 = vmatprep.subr.bf16.mxu0 0
        %1246 = vmatpush1.bf16.msra.mxu0 0
        %1247 = vmatprep.mubr.bf16.mxu0 0
        %1248 = vmatmul.mubr.bf16.gmra.mrb[0].mxu0 %v1135
        %v1249 = vpop.f32.mrb[0].mxu0
        %v1250 = vadd.f32 %v1069, %v1249
        %v1251 = vpop.f32.mrb[0].mxu0
        %v1252 = vpop.f32.mrb[0].mxu0
        %v1253 = vadd.f32 %v1069, %v1252
        %v1254 = vpop.f32.mrb[0].mxu0
        %1255 = vmatprep.mubr.bf16.mxu0 0
        %1256 = vmatmul.mubr.bf16.gmra.mrb[0].mxu0 %v1136
        %v1257 = vpop.f32.mrb[0].mxu0
        %v1258 = vadd.f32 %v1069, %v1257
        %v1259 = vpop.f32.mrb[0].mxu0
        %v1260 = vpop.f32.mrb[0].mxu0
        %v1261 = vadd.f32 %v1069, %v1260
        %v1262 = vpop.f32.mrb[0].mxu0
        %1263 = vmatprep.mubr.bf16.mxu0 0
        %1264 = vmatmul.mubr.bf16.gmra.mrb[0].mxu0 %v1137
        %v1265 = vpop.f32.mrb[0].mxu0
        %v1266 = vadd.f32 %v1069, %v1265
        %v1267 = vpop.f32.mrb[0].mxu0
        %v1268 = vpop.f32.mrb[0].mxu0
        %v1269 = vadd.f32 %v1069, %v1268
        %v1270 = vpop.f32.mrb[0].mxu0
        %1271 = vmatprep.mubr.bf16.mxu0 0
        %1272 = vmatmul.mubr.bf16.gmra.mrb[0].mxu0 %v1138
        %v1273 = vpop.f32.mrb[0].mxu0
        %v1274 = vadd.f32 %v1069, %v1273
        %v1275 = vpop.f32.mrb[0].mxu0
        %v1276 = vpop.f32.mrb[0].mxu0
        %v1277 = vadd.f32 %v1069, %v1276
        %v1278 = vpop.f32.mrb[0].mxu0
        %1279 = vmatprep.mubr.bf16.mxu0 0
        %1280 = vmatmul.mubr.bf16.gmra.mrb[0].mxu0 %v1139
        %v1281 = vpop.f32.mrb[0].mxu0
        %v1282 = vadd.f32 %v1069, %v1281
        %v1283 = vpop.f32.mrb[0].mxu0
        %v1284 = vpop.f32.mrb[0].mxu0
        %v1285 = vadd.f32 %v1069, %v1284
        %v1286 = vpop.f32.mrb[0].mxu0
        %1287 = vmatprep.mubr.bf16.mxu0 0
        %1288 = vmatmul.mubr.bf16.gmra.mrb[0].mxu0 %v1140
        %v1289 = vpop.f32.mrb[0].mxu0
        %v1290 = vadd.f32 %v1069, %v1289
        %v1291 = vpop.f32.mrb[0].mxu0
        %v1292 = vpop.f32.mrb[0].mxu0
        %v1293 = vadd.f32 %v1069, %v1292
        %v1294 = vpop.f32.mrb[0].mxu0
        %1295 = vmatprep.mubr.bf16.mxu0 0
        %1296 = vmatmul.mubr.bf16.gmra.mrb[0].mxu0 %v1141
        %v1297 = vpop.f32.mrb[0].mxu0
        %v1298 = vadd.f32 %v1069, %v1297
        %v1299 = vpop.f32.mrb[0].mxu0
        %v1300 = vpop.f32.mrb[0].mxu0
        %v1301 = vadd.f32 %v1069, %v1300
        %v1302 = vpop.f32.mrb[0].mxu0
        %1303 = vmatprep.mubr.bf16.mxu0 0
        %1304 = vmatmul.mubr.bf16.gmra.mrb[0].mxu0 %v1142
        %v1305 = vpop.f32.mrb[0].mxu0
        %v1306 = vadd.f32 %v1069, %v1305
        %v1307 = vpop.f32.mrb[0].mxu0
        %v1308 = vpop.f32.mrb[0].mxu0
        %v1309 = vadd.f32 %v1069, %v1308
        %v1310 = vpop.f32.mrb[0].mxu0
        %1311 = vmatprep.mubr.bf16.mxu0 0
        %1312 = vmatmul.mubr.bf16.gmra.mrb[0].mxu0 %v1143
        %v1313 = vpop.f32.mrb[0].mxu0
        %v1314 = vadd.f32 %v1069, %v1313
        %v1315 = vpop.f32.mrb[0].mxu0
        %v1316 = vpop.f32.mrb[0].mxu0
        %v1317 = vadd.f32 %v1069, %v1316
        %v1318 = vpop.f32.mrb[0].mxu0
        %1319 = vmatprep.mubr.bf16.mxu0 0
        %1320 = vmatmul.mubr.bf16.gmra.mrb[0].mxu0 %v1144
        %v1321 = vpop.f32.mrb[0].mxu0
        %v1322 = vadd.f32 %v1069, %v1321
        %v1323 = vpop.f32.mrb[0].mxu0
        %v1324 = vpop.f32.mrb[0].mxu0
        %v1325 = vadd.f32 %v1069, %v1324
        %v1326 = vpop.f32.mrb[0].mxu0
        %1327 = vmatprep.mubr.bf16.mxu0 0
        %1328 = vmatmul.mubr.bf16.gmra.mrb[0].mxu0 %v1145
        %v1329 = vpop.f32.mrb[0].mxu0
        %v1330 = vadd.f32 %v1069, %v1329
        %v1331 = vpop.f32.mrb[0].mxu0
        %v1332 = vpop.f32.mrb[0].mxu0
        %v1333 = vadd.f32 %v1069, %v1332
        %v1334 = vpop.f32.mrb[0].mxu0
        %1335 = vmatprep.mubr.bf16.mxu0 0
        %1336 = vmatmul.mubr.bf16.gmra.mrb[0].mxu0 %v1146
        %v1337 = vpop.f32.mrb[0].mxu0
        %v1338 = vadd.f32 %v1069, %v1337
        %v1339 = vpop.f32.mrb[0].mxu0
        %v1340 = vpop.f32.mrb[0].mxu0
        %v1341 = vadd.f32 %v1069, %v1340
        %v1342 = vpop.f32.mrb[0].mxu0
        %1343 = vmatprep.mubr.bf16.mxu0 0
        %1344 = vmatmul.mubr.bf16.gmra.mrb[0].mxu0 %v1147
        %v1345 = vpop.f32.mrb[0].mxu0
        %v1346 = vadd.f32 %v1069, %v1345
        %v1347 = vpop.f32.mrb[0].mxu0
        %v1348 = vpop.f32.mrb[0].mxu0
        %v1349 = vadd.f32 %v1069, %v1348
        %v1350 = vpop.f32.mrb[0].mxu0
        %1351 = vmatprep.mubr.bf16.mxu0 0
        %1352 = vmatmul.mubr.bf16.gmra.mrb[0].mxu0 %v1148
        %v1353 = vpop.f32.mrb[0].mxu0
        %v1354 = vadd.f32 %v1069, %v1353
        %v1355 = vpop.f32.mrb[0].mxu0
        %v1356 = vpop.f32.mrb[0].mxu0
        %v1357 = vadd.f32 %v1069, %v1356
        %v1358 = vpop.f32.mrb[0].mxu0
        %1359 = vmatprep.mubr.bf16.mxu0 0
        %1360 = vmatmul.mubr.bf16.gmra.mrb[0].mxu0 %v1149
        %v1361 = vpop.f32.mrb[0].mxu0
        %v1362 = vadd.f32 %v1069, %v1361
        %v1363 = vpop.f32.mrb[0].mxu0
        %v1364 = vpop.f32.mrb[0].mxu0
        %v1365 = vadd.f32 %v1069, %v1364
        %v1366 = vpop.f32.mrb[0].mxu0
        %1367 = vmatprep.mubr.bf16.mxu0 0
        %1368 = vmatmul.mubr.bf16.gmra.mrb[0].mxu0 %v1150
        %v1369 = vpop.f32.mrb[0].mxu0
        %v1370 = vadd.f32 %v1069, %v1369
        %v1371 = vpop.f32.mrb[0].mxu0
        %v1372 = vpop.f32.mrb[0].mxu0
        %v1373 = vadd.f32 %v1069, %v1372
        %v1374 = vpop.f32.mrb[0].mxu0
        %1375 = vdwg.mxu0
        %v1376 = vmax.f32 %v1250, 0.0
        %v1377 = vmax.f32 %v1253, 0.0
        %v1378 = vmax.f32 %v1258, 0.0
        %v1379 = vmax.f32 %v1261, 0.0
        %v1380 = vmax.f32 %v1266, 0.0
        %v1381 = vmax.f32 %v1269, 0.0
        %v1382 = vmax.f32 %v1274, 0.0
        %v1383 = vmax.f32 %v1277, 0.0
        %v1384 = vmax.f32 %v1282, 0.0
        %v1385 = vmax.f32 %v1285, 0.0
        %v1386 = vmax.f32 %v1290, 0.0
        %v1387 = vmax.f32 %v1293, 0.0
        %v1388 = vmax.f32 %v1298, 0.0
        %v1389 = vmax.f32 %v1301, 0.0
        %v1390 = vmax.f32 %v1306, 0.0
        %v1391 = vmax.f32 %v1309, 0.0
        %v1392 = vmax.f32 %v1314, 0.0
        %v1393 = vmax.f32 %v1317, 0.0
        %v1394 = vmax.f32 %v1322, 0.0
        %v1395 = vmax.f32 %v1325, 0.0
        %v1396 = vmax.f32 %v1330, 0.0
        %v1397 = vmax.f32 %v1333, 0.0
        %v1398 = vmax.f32 %v1338, 0.0
        %v1399 = vmax.f32 %v1341, 0.0
        %v1400 = vmax.f32 %v1346, 0.0
        %v1401 = vmax.f32 %v1349, 0.0
        %v1402 = vmax.f32 %v1354, 0.0
        %v1403 = vmax.f32 %v1357, 0.0
        %v1404 = vmax.f32 %v1362, 0.0
        %v1405 = vmax.f32 %v1365, 0.0
        %v1406 = vmax.f32 %v1370, 0.0
        %v1407 = vmax.f32 %v1373, 0.0
        %v1408 = vpack.c.bf16 %v1377, %v1376
        %v1409 = vpack.c.bf16 %v1379, %v1378
        %v1410 = vpack.c.bf16 %v1381, %v1380
        %v1411 = vpack.c.bf16 %v1383, %v1382
        %v1412 = vpack.c.bf16 %v1385, %v1384
        %v1413 = vpack.c.bf16 %v1387, %v1386
        %v1414 = vpack.c.bf16 %v1389, %v1388
        %v1415 = vpack.c.bf16 %v1391, %v1390
        %v1416 = vpack.c.bf16 %v1393, %v1392
        %v1417 = vpack.c.bf16 %v1395, %v1394
        %v1418 = vpack.c.bf16 %v1397, %v1396
        %v1419 = vpack.c.bf16 %v1399, %v1398
        %v1420 = vpack.c.bf16 %v1401, %v1400
        %v1421 = vpack.c.bf16 %v1403, %v1402
        %v1422 = vpack.c.bf16 %v1405, %v1404
        %v1423 = vpack.c.bf16 %v1407, %v1406
        %s1424 = sshra.s32 %s1011, 4
        %s1425 = sand.u32 %s1011, 15
        %s1426 = smul.addr %s1424, 8
        %s1427 = scalar_lea.vmem [#allocation2], %s1426
        %1428 = vst [vmem:[%s1427] sm:$0xff] %v1408
        %1429 = vst [vmem:[%s1427 + $0x8] sm:$0xff] %v1409
        %1430 = vst [vmem:[%s1427 + $0x10] sm:$0xff] %v1410
        %1431 = vst [vmem:[%s1427 + $0x18] sm:$0xff] %v1411
        %1432 = vst [vmem:[%s1427 + $0x20] sm:$0xff] %v1412
        %1433 = vst [vmem:[%s1427 + $0x28] sm:$0xff] %v1413
        %1434 = vst [vmem:[%s1427 + $0x30] sm:$0xff] %v1414
        %1435 = vst [vmem:[%s1427 + $0x38] sm:$0xff] %v1415
        %1436 = vst [vmem:[%s1427 + $0x40] sm:$0xff] %v1416
        %1437 = vst [vmem:[%s1427 + $0x48] sm:$0xff] %v1417
        %1438 = vst [vmem:[%s1427 + $0x50] sm:$0xff] %v1418
        %1439 = vst [vmem:[%s1427 + $0x58] sm:$0xff] %v1419
        %1440 = vst [vmem:[%s1427 + $0x60] sm:$0xff] %v1420
        %1441 = vst [vmem:[%s1427 + $0x68] sm:$0xff] %v1421
        %1442 = vst [vmem:[%s1427 + $0x70] sm:$0xff] %v1422
        %1443 = vst [vmem:[%s1427 + $0x78] sm:$0xff] %v1423
        %v1444 = vlaneseq
        %v1445 = vshrl.u32 %v1444, 7
        %v1446 = vadd.s32 %v1445, 8
        %v1447 = vadd.s32 %v1445, 16
        %v1448 = vadd.s32 %v1445, 24
        %v1449 = vadd.s32 %v1445, 32
        %v1450 = vadd.s32 %v1445, 40
        %v1451 = vadd.s32 %v1445, 48
        %v1452 = vadd.s32 %v1445, 56
        %v1453 = vadd.s32 %v1445, 64
        %v1454 = vadd.s32 %v1445, 72
        %v1455 = vadd.s32 %v1445, 80
        %v1456 = vadd.s32 %v1445, 88
        %v1457 = vadd.s32 %v1445, 96
        %v1458 = vadd.s32 %v1445, 104
        %v1459 = vadd.s32 %v1445, 112
        %v1460 = vadd.s32 %v1445, 120
        %v1461 = vadd.s32 %v1445, 128
        %v1462 = vadd.s32 %v1445, 136
        %v1463 = vadd.s32 %v1445, 144
        %v1464 = vadd.s32 %v1445, 152
        %v1465 = vadd.s32 %v1445, 160
        %v1466 = vadd.s32 %v1445, 168
        %v1467 = vadd.s32 %v1445, 176
        %v1468 = vadd.s32 %v1445, 184
        %v1469 = vadd.s32 %v1445, 192
        %v1470 = vadd.s32 %v1445, 200
        %v1471 = vadd.s32 %v1445, 208
        %v1472 = vadd.s32 %v1445, 216
        %v1473 = vadd.s32 %v1445, 224
        %v1474 = vadd.s32 %v1445, 232
        %v1475 = vadd.s32 %v1445, 240
        %v1476 = vadd.s32 %v1445, 248
        %v1477 = vstv %s1011
        %v1478 = vadd.s32 %v1477, %v1445
        %v1479 = vadd.s32 %v1477, %v1446
        %v1480 = vadd.s32 %v1477, %v1447
        %v1481 = vadd.s32 %v1477, %v1448
        %v1482 = vadd.s32 %v1477, %v1449
        %v1483 = vadd.s32 %v1477, %v1450
        %v1484 = vadd.s32 %v1477, %v1451
        %v1485 = vadd.s32 %v1477, %v1452
        %v1486 = vadd.s32 %v1477, %v1453
        %v1487 = vadd.s32 %v1477, %v1454
        %v1488 = vadd.s32 %v1477, %v1455
        %v1489 = vadd.s32 %v1477, %v1456
        %v1490 = vadd.s32 %v1477, %v1457
        %v1491 = vadd.s32 %v1477, %v1458
        %v1492 = vadd.s32 %v1477, %v1459
        %v1493 = vadd.s32 %v1477, %v1460
        %v1494 = vadd.s32 %v1477, %v1461
        %v1495 = vadd.s32 %v1477, %v1462
        %v1496 = vadd.s32 %v1477, %v1463
        %v1497 = vadd.s32 %v1477, %v1464
        %v1498 = vadd.s32 %v1477, %v1465
        %v1499 = vadd.s32 %v1477, %v1466
        %v1500 = vadd.s32 %v1477, %v1467
        %v1501 = vadd.s32 %v1477, %v1468
        %v1502 = vadd.s32 %v1477, %v1469
        %v1503 = vadd.s32 %v1477, %v1470
        %v1504 = vadd.s32 %v1477, %v1471
        %v1505 = vadd.s32 %v1477, %v1472
        %v1506 = vadd.s32 %v1477, %v1473
        %v1507 = vadd.s32 %v1477, %v1474
        %v1508 = vadd.s32 %v1477, %v1475
        %v1509 = vadd.s32 %v1477, %v1476
        %vm1510 = vcmp.lt.s32.totalorder %v1478, 600
        %vm1511 = vcmp.lt.s32.totalorder %v1479, 600
        %vm1512 = vcmp.lt.s32.totalorder %v1480, 600
        %vm1513 = vcmp.lt.s32.totalorder %v1481, 600
        %vm1514 = vcmp.lt.s32.totalorder %v1482, 600
        %vm1515 = vcmp.lt.s32.totalorder %v1483, 600
        %vm1516 = vcmp.lt.s32.totalorder %v1484, 600
        %vm1517 = vcmp.lt.s32.totalorder %v1485, 600
        %vm1518 = vcmp.lt.s32.totalorder %v1486, 600
        %vm1519 = vcmp.lt.s32.totalorder %v1487, 600
        %vm1520 = vcmp.lt.s32.totalorder %v1488, 600
        %vm1521 = vcmp.lt.s32.totalorder %v1489, 600
        %vm1522 = vcmp.lt.s32.totalorder %v1490, 600
        %vm1523 = vcmp.lt.s32.totalorder %v1491, 600
        %vm1524 = vcmp.lt.s32.totalorder %v1492, 600
        %vm1525 = vcmp.lt.s32.totalorder %v1493, 600
        %vm1526 = vcmp.lt.s32.totalorder %v1494, 600
        %vm1527 = vcmp.lt.s32.totalorder %v1495, 600
        %vm1528 = vcmp.lt.s32.totalorder %v1496, 600
        %vm1529 = vcmp.lt.s32.totalorder %v1497, 600
        %vm1530 = vcmp.lt.s32.totalorder %v1498, 600
        %vm1531 = vcmp.lt.s32.totalorder %v1499, 600
        %vm1532 = vcmp.lt.s32.totalorder %v1500, 600
        %vm1533 = vcmp.lt.s32.totalorder %v1501, 600
        %vm1534 = vcmp.lt.s32.totalorder %v1502, 600
        %vm1535 = vcmp.lt.s32.totalorder %v1503, 600
        %vm1536 = vcmp.lt.s32.totalorder %v1504, 600
        %vm1537 = vcmp.lt.s32.totalorder %v1505, 600
        %vm1538 = vcmp.lt.s32.totalorder %v1506, 600
        %vm1539 = vcmp.lt.s32.totalorder %v1507, 600
        %vm1540 = vcmp.lt.s32.totalorder %v1508, 600
        %vm1541 = vcmp.lt.s32.totalorder %v1509, 600
        %v1542 = vsel %vm1510, %v1376, 0.0
        %v1543 = vsel %vm1511, %v1377, 0.0
        %v1544 = vsel %vm1512, %v1378, 0.0
        %v1545 = vsel %vm1513, %v1379, 0.0
        %v1546 = vsel %vm1514, %v1380, 0.0
        %v1547 = vsel %vm1515, %v1381, 0.0
        %v1548 = vsel %vm1516, %v1382, 0.0
        %v1549 = vsel %vm1517, %v1383, 0.0
        %v1550 = vsel %vm1518, %v1384, 0.0
        %v1551 = vsel %vm1519, %v1385, 0.0
        %v1552 = vsel %vm1520, %v1386, 0.0
        %v1553 = vsel %vm1521, %v1387, 0.0
        %v1554 = vsel %vm1522, %v1388, 0.0
        %v1555 = vsel %vm1523, %v1389, 0.0
        %v1556 = vsel %vm1524, %v1390, 0.0
        %v1557 = vsel %vm1525, %v1391, 0.0
        %v1558 = vsel %vm1526, %v1392, 0.0
        %v1559 = vsel %vm1527, %v1393, 0.0
        %v1560 = vsel %vm1528, %v1394, 0.0
        %v1561 = vsel %vm1529, %v1395, 0.0
        %v1562 = vsel %vm1530, %v1396, 0.0
        %v1563 = vsel %vm1531, %v1397, 0.0
        %v1564 = vsel %vm1532, %v1398, 0.0
        %v1565 = vsel %vm1533, %v1399, 0.0
        %v1566 = vsel %vm1534, %v1400, 0.0
        %v1567 = vsel %vm1535, %v1401, 0.0
        %v1568 = vsel %vm1536, %v1402, 0.0
        %v1569 = vsel %vm1537, %v1403, 0.0
        %v1570 = vsel %vm1538, %v1404, 0.0
        %v1571 = vsel %vm1539, %v1405, 0.0
        %v1572 = vsel %vm1540, %v1406, 0.0
        %v1573 = vsel %vm1541, %v1407, 0.0
        %v1574 = vld [vmem:[#allocation3] sm:$0x1]
        %v1575 = vadd.f32 %v1542, %v1543
        %v1576 = vadd.f32 %v1575, %v1544
        %v1577 = vadd.f32 %v1576, %v1545
        %v1578 = vadd.f32 %v1577, %v1546
        %v1579 = vadd.f32 %v1578, %v1547
        %v1580 = vadd.f32 %v1579, %v1548
        %v1581 = vadd.f32 %v1580, %v1549
        %v1582 = vadd.f32 %v1581, %v1550
        %v1583 = vadd.f32 %v1582, %v1551
        %v1584 = vadd.f32 %v1583, %v1552
        %v1585 = vadd.f32 %v1584, %v1553
        %v1586 = vadd.f32 %v1585, %v1554
        %v1587 = vadd.f32 %v1586, %v1555
        %v1588 = vadd.f32 %v1587, %v1556
        %v1589 = vadd.f32 %v1588, %v1557
        %v1590 = vadd.f32 %v1589, %v1558
        %v1591 = vadd.f32 %v1590, %v1559
        %v1592 = vadd.f32 %v1591, %v1560
        %v1593 = vadd.f32 %v1592, %v1561
        %v1594 = vadd.f32 %v1593, %v1562
        %v1595 = vadd.f32 %v1594, %v1563
        %v1596 = vadd.f32 %v1595, %v1564
        %v1597 = vadd.f32 %v1596, %v1565
        %v1598 = vadd.f32 %v1597, %v1566
        %v1599 = vadd.f32 %v1598, %v1567
        %v1600 = vadd.f32 %v1599, %v1568
        %v1601 = vadd.f32 %v1600, %v1569
        %v1602 = vadd.f32 %v1601, %v1570
        %v1603 = vadd.f32 %v1602, %v1571
        %v1604 = vadd.f32 %v1603, %v1572
        %v1605 = vadd.f32 %v1604, %v1573
        %v1606 = vrot.slane %v1605, 4
        %v1607 = vadd.f32 %v1605, %v1606
        %v1608 = vrot.slane %v1607, 2
        %v1609 = vadd.f32 %v1607, %v1608
        %v1610 = vrot.slane %v1609, 1
        %v1611 = vadd.f32 %v1609, %v1610
        %v1612 = vadd.f32 %v1574, %v1611
        %1613 = vst [vmem:[#allocation3] sm:$0x1] %v1612
        %v1614 = vld [vmem:[#allocation4] sm:$0x1]
        %v1615 = vmul.f32 %v1542, %v1542
        %v1616 = vmul.f32 %v1543, %v1543
        %v1617 = vmul.f32 %v1544, %v1544
        %v1618 = vmul.f32 %v1545, %v1545
        %v1619 = vmul.f32 %v1546, %v1546
        %v1620 = vmul.f32 %v1547, %v1547
        %v1621 = vmul.f32 %v1548, %v1548
        %v1622 = vmul.f32 %v1549, %v1549
        %v1623 = vmul.f32 %v1550, %v1550
        %v1624 = vmul.f32 %v1551, %v1551
        %v1625 = vmul.f32 %v1552, %v1552
        %v1626 = vmul.f32 %v1553, %v1553
        %v1627 = vmul.f32 %v1554, %v1554
        %v1628 = vmul.f32 %v1555, %v1555
        %v1629 = vmul.f32 %v1556, %v1556
        %v1630 = vmul.f32 %v1557, %v1557
        %v1631 = vmul.f32 %v1558, %v1558
        %v1632 = vmul.f32 %v1559, %v1559
        %v1633 = vmul.f32 %v1560, %v1560
        %v1634 = vmul.f32 %v1561, %v1561
        %v1635 = vmul.f32 %v1562, %v1562
        %v1636 = vmul.f32 %v1563, %v1563
        %v1637 = vmul.f32 %v1564, %v1564
        %v1638 = vmul.f32 %v1565, %v1565
        %v1639 = vmul.f32 %v1566, %v1566
        %v1640 = vmul.f32 %v1567, %v1567
        %v1641 = vmul.f32 %v1568, %v1568
        %v1642 = vmul.f32 %v1569, %v1569
        %v1643 = vmul.f32 %v1570, %v1570
        %v1644 = vmul.f32 %v1571, %v1571
        %v1645 = vmul.f32 %v1572, %v1572
        %v1646 = vmul.f32 %v1573, %v1573
        %v1647 = vadd.f32 %v1615, %v1616
        %v1648 = vadd.f32 %v1647, %v1617
        %v1649 = vadd.f32 %v1648, %v1618
        %v1650 = vadd.f32 %v1649, %v1619
        %v1651 = vadd.f32 %v1650, %v1620
        %v1652 = vadd.f32 %v1651, %v1621
        %v1653 = vadd.f32 %v1652, %v1622
        %v1654 = vadd.f32 %v1653, %v1623
        %v1655 = vadd.f32 %v1654, %v1624
        %v1656 = vadd.f32 %v1655, %v1625
        %v1657 = vadd.f32 %v1656, %v1626
        %v1658 = vadd.f32 %v1657, %v1627
        %v1659 = vadd.f32 %v1658, %v1628
        %v1660 = vadd.f32 %v1659, %v1629
        %v1661 = vadd.f32 %v1660, %v1630
        %v1662 = vadd.f32 %v1661, %v1631
        %v1663 = vadd.f32 %v1662, %v1632
        %v1664 = vadd.f32 %v1663, %v1633
        %v1665 = vadd.f32 %v1664, %v1634
        %v1666 = vadd.f32 %v1665, %v1635
        %v1667 = vadd.f32 %v1666, %v1636
        %v1668 = vadd.f32 %v1667, %v1637
        %v1669 = vadd.f32 %v1668, %v1638
        %v1670 = vadd.f32 %v1669, %v1639
        %v1671 = vadd.f32 %v1670, %v1640
        %v1672 = vadd.f32 %v1671, %v1641
        %v1673 = vadd.f32 %v1672, %v1642
        %v1674 = vadd.f32 %v1673, %v1643
        %v1675 = vadd.f32 %v1674, %v1644
        %v1676 = vadd.f32 %v1675, %v1645
        %v1677 = vadd.f32 %v1676, %v1646
        %v1678 = vrot.slane %v1677, 4
        %v1679 = vadd.f32 %v1677, %v1678
        %v1680 = vrot.slane %v1679, 2
        %v1681 = vadd.f32 %v1679, %v1680
        %v1682 = vrot.slane %v1681, 1
        %v1683 = vadd.f32 %v1681, %v1682
        %v1684 = vadd.f32 %v1614, %v1683
        %1685 = vst [vmem:[#allocation4] sm:$0x1] %v1684
      $region80: #{mlp_forward.1} parent=55 // pred_fallthru
        _
      %p1686 = scmp.gt.s32.totalorder %s24, 0
      %p1687 = scmp.lt.s32.totalorder %s24, 2
      %p1688 = pnand %p1686, %p1687
      %p1689 = pneg %p1688
      // Predicated region
      $region81: #{mlp_forward.1} parent=55 // pred_check
        _
      $region82: #{mlp_forward.1} parent=55 // pred_check_branch
        %1691 = sbr.rel (%p1688) target = $region84
      $region83: #{mlp_forward.1} parent=55 // pred_region
        %s1692 = sshra.s32 %s1011, 4
        %s1693 = sand.u32 %s1011, 15
        %s1694 = smul.addr %s1692, 8
        %s1695 = scalar_lea.vmem [#allocation2], %s1694
        %v1696 = vld [vmem:[%s1695] sm:$0xff]
        %v1697 = vld [vmem:[%s1695 + $0x8] sm:$0xff]
        %v1698 = vld [vmem:[%s1695 + $0x10] sm:$0xff]
        %v1699 = vld [vmem:[%s1695 + $0x18] sm:$0xff]
        %v1700 = vld [vmem:[%s1695 + $0x20] sm:$0xff]
        %v1701 = vld [vmem:[%s1695 + $0x28] sm:$0xff]
        %v1702 = vld [vmem:[%s1695 + $0x30] sm:$0xff]
        %v1703 = vld [vmem:[%s1695 + $0x38] sm:$0xff]
        %v1704 = vld [vmem:[%s1695 + $0x40] sm:$0xff]
        %v1705 = vld [vmem:[%s1695 + $0x48] sm:$0xff]
        %v1706 = vld [vmem:[%s1695 + $0x50] sm:$0xff]
        %v1707 = vld [vmem:[%s1695 + $0x58] sm:$0xff]
        %v1708 = vld [vmem:[%s1695 + $0x60] sm:$0xff]
        %v1709 = vld [vmem:[%s1695 + $0x68] sm:$0xff]
        %v1710 = vld [vmem:[%s1695 + $0x70] sm:$0xff]
        %v1711 = vld [vmem:[%s1695 + $0x78] sm:$0xff]
        %v1712 = vld [vmem:[#allocation5] sm:$0xff]
        %v1713 = vld [vmem:[#allocation5 + $0x8] sm:$0xff]
        %v1714 = vld [vmem:[#allocation5 + $0x10] sm:$0xff]
        %v1715 = vld [vmem:[#allocation5 + $0x18] sm:$0xff]
        %v1716 = vld [vmem:[#allocation5 + $0x20] sm:$0xff]
        %v1717 = vld [vmem:[#allocation5 + $0x28] sm:$0xff]
        %v1718 = vld [vmem:[#allocation5 + $0x30] sm:$0xff]
        %v1719 = vld [vmem:[#allocation5 + $0x38] sm:$0xff]
        %v1720 = vld [vmem:[#allocation6] sm:$0x1]
        %v1722 = vlaneseq
        %v1723 = vshrl.u32 %v1722, 7
        %v1724 = vsub.s32 0, %v1723
        %v1725 = vrot.slane %v1720, %v1724
        %1727 = vmatprep.subr.bf16.mxu0 0
        %1728 = vmatpush1.bf16.msra.mxu0 %v1712
        %1729 = vmatprep.subr.bf16.mxu0 0
        %1730 = vmatpush1.bf16.msra.mxu0 %v1713
        %1731 = vmatprep.subr.bf16.mxu0 0
        %1732 = vmatpush1.bf16.msra.mxu0 %v1714
        %1733 = vmatprep.subr.bf16.mxu0 0
        %1734 = vmatpush1.bf16.msra.mxu0 %v1715
        %1735 = vmatprep.subr.bf16.mxu0 0
        %1736 = vmatpush1.bf16.msra.mxu0 %v1716
        %1737 = vmatprep.subr.bf16.mxu0 0
        %1738 = vmatpush1.bf16.msra.mxu0 %v1717
        %1739 = vmatprep.subr.bf16.mxu0 0
        %1740 = vmatpush1.bf16.msra.mxu0 %v1718
        %1741 = vmatprep.subr.bf16.mxu0 0
        %1742 = vmatpush1.bf16.msra.mxu0 %v1719
        %1743 = vmatprep.subr.bf16.mxu0 0
        %1744 = vmatpush1.bf16.msra.mxu0 0
        %1745 = vmatprep.subr.bf16.mxu0 0
        %1746 = vmatpush1.bf16.msra.mxu0 0
        %1747 = vmatprep.subr.bf16.mxu0 0
        %1748 = vmatpush1.bf16.msra.mxu0 0
        %1749 = vmatprep.subr.bf16.mxu0 0
        %1750 = vmatpush1.bf16.msra.mxu0 0
        %1751 = vmatprep.subr.bf16.mxu0 0
        %1752 = vmatpush1.bf16.msra.mxu0 0
        %1753 = vmatprep.subr.bf16.mxu0 0
        %1754 = vmatpush1.bf16.msra.mxu0 0
        %1755 = vmatprep.subr.bf16.mxu0 0
        %1756 = vmatpush1.bf16.msra.mxu0 0
        %1757 = vmatprep.subr.bf16.mxu0 0
        %1758 = vmatpush1.bf16.msra.mxu0 0
        %1759 = vmatprep.mubr.bf16.mxu0 0
        %1760 = vmatmul.mubr.bf16.gmra.mrb[0].mxu0 %v1696
        %v1761 = vpop.f32.mrb[0].mxu0
        %v1762 = vadd.f32 %v1725, %v1761
        %v1763 = vpop.f32.mrb[0].mxu0
        %v1764 = vpop.f32.mrb[0].mxu0
        %v1765 = vadd.f32 %v1725, %v1764
        %v1766 = vpop.f32.mrb[0].mxu0
        %1767 = vmatprep.mubr.bf16.mxu0 0
        %1768 = vmatmul.mubr.bf16.gmra.mrb[0].mxu0 %v1697
        %v1769 = vpop.f32.mrb[0].mxu0
        %v1770 = vadd.f32 %v1725, %v1769
        %v1771 = vpop.f32.mrb[0].mxu0
        %v1772 = vpop.f32.mrb[0].mxu0
        %v1773 = vadd.f32 %v1725, %v1772
        %v1774 = vpop.f32.mrb[0].mxu0
        %1775 = vmatprep.mubr.bf16.mxu0 0
        %1776 = vmatmul.mubr.bf16.gmra.mrb[0].mxu0 %v1698
        %v1777 = vpop.f32.mrb[0].mxu0
        %v1778 = vadd.f32 %v1725, %v1777
        %v1779 = vpop.f32.mrb[0].mxu0
        %v1780 = vpop.f32.mrb[0].mxu0
        %v1781 = vadd.f32 %v1725, %v1780
        %v1782 = vpop.f32.mrb[0].mxu0
        %1783 = vmatprep.mubr.bf16.mxu0 0
        %1784 = vmatmul.mubr.bf16.gmra.mrb[0].mxu0 %v1699
        %v1785 = vpop.f32.mrb[0].mxu0
        %v1786 = vadd.f32 %v1725, %v1785
        %v1787 = vpop.f32.mrb[0].mxu0
        %v1788 = vpop.f32.mrb[0].mxu0
        %v1789 = vadd.f32 %v1725, %v1788
        %v1790 = vpop.f32.mrb[0].mxu0
        %1791 = vmatprep.mubr.bf16.mxu0 0
        %1792 = vmatmul.mubr.bf16.gmra.mrb[0].mxu0 %v1700
        %v1793 = vpop.f32.mrb[0].mxu0
        %v1794 = vadd.f32 %v1725, %v1793
        %v1795 = vpop.f32.mrb[0].mxu0
        %v1796 = vpop.f32.mrb[0].mxu0
        %v1797 = vadd.f32 %v1725, %v1796
        %v1798 = vpop.f32.mrb[0].mxu0
        %1799 = vmatprep.mubr.bf16.mxu0 0
        %1800 = vmatmul.mubr.bf16.gmra.mrb[0].mxu0 %v1701
        %v1801 = vpop.f32.mrb[0].mxu0
        %v1802 = vadd.f32 %v1725, %v1801
        %v1803 = vpop.f32.mrb[0].mxu0
        %v1804 = vpop.f32.mrb[0].mxu0
        %v1805 = vadd.f32 %v1725, %v1804
        %v1806 = vpop.f32.mrb[0].mxu0
        %1807 = vmatprep.mubr.bf16.mxu0 0
        %1808 = vmatmul.mubr.bf16.gmra.mrb[0].mxu0 %v1702
        %v1809 = vpop.f32.mrb[0].mxu0
        %v1810 = vadd.f32 %v1725, %v1809
        %v1811 = vpop.f32.mrb[0].mxu0
        %v1812 = vpop.f32.mrb[0].mxu0
        %v1813 = vadd.f32 %v1725, %v1812
        %v1814 = vpop.f32.mrb[0].mxu0
        %1815 = vmatprep.mubr.bf16.mxu0 0
        %1816 = vmatmul.mubr.bf16.gmra.mrb[0].mxu0 %v1703
        %v1817 = vpop.f32.mrb[0].mxu0
        %v1818 = vadd.f32 %v1725, %v1817
        %v1819 = vpop.f32.mrb[0].mxu0
        %v1820 = vpop.f32.mrb[0].mxu0
        %v1821 = vadd.f32 %v1725, %v1820
        %v1822 = vpop.f32.mrb[0].mxu0
        %1823 = vmatprep.mubr.bf16.mxu0 0
        %1824 = vmatmul.mubr.bf16.gmra.mrb[0].mxu0 %v1704
        %v1825 = vpop.f32.mrb[0].mxu0
        %v1826 = vadd.f32 %v1725, %v1825
        %v1827 = vpop.f32.mrb[0].mxu0
        %v1828 = vpop.f32.mrb[0].mxu0
        %v1829 = vadd.f32 %v1725, %v1828
        %v1830 = vpop.f32.mrb[0].mxu0
        %1831 = vmatprep.mubr.bf16.mxu0 0
        %1832 = vmatmul.mubr.bf16.gmra.mrb[0].mxu0 %v1705
        %v1833 = vpop.f32.mrb[0].mxu0
        %v1834 = vadd.f32 %v1725, %v1833
        %v1835 = vpop.f32.mrb[0].mxu0
        %v1836 = vpop.f32.mrb[0].mxu0
        %v1837 = vadd.f32 %v1725, %v1836
        %v1838 = vpop.f32.mrb[0].mxu0
        %1839 = vmatprep.mubr.bf16.mxu0 0
        %1840 = vmatmul.mubr.bf16.gmra.mrb[0].mxu0 %v1706
        %v1841 = vpop.f32.mrb[0].mxu0
        %v1842 = vadd.f32 %v1725, %v1841
        %v1843 = vpop.f32.mrb[0].mxu0
        %v1844 = vpop.f32.mrb[0].mxu0
        %v1845 = vadd.f32 %v1725, %v1844
        %v1846 = vpop.f32.mrb[0].mxu0
        %1847 = vmatprep.mubr.bf16.mxu0 0
        %1848 = vmatmul.mubr.bf16.gmra.mrb[0].mxu0 %v1707
        %v1849 = vpop.f32.mrb[0].mxu0
        %v1850 = vadd.f32 %v1725, %v1849
        %v1851 = vpop.f32.mrb[0].mxu0
        %v1852 = vpop.f32.mrb[0].mxu0
        %v1853 = vadd.f32 %v1725, %v1852
        %v1854 = vpop.f32.mrb[0].mxu0
        %1855 = vmatprep.mubr.bf16.mxu0 0
        %1856 = vmatmul.mubr.bf16.gmra.mrb[0].mxu0 %v1708
        %v1857 = vpop.f32.mrb[0].mxu0
        %v1858 = vadd.f32 %v1725, %v1857
        %v1859 = vpop.f32.mrb[0].mxu0
        %v1860 = vpop.f32.mrb[0].mxu0
        %v1861 = vadd.f32 %v1725, %v1860
        %v1862 = vpop.f32.mrb[0].mxu0
        %1863 = vmatprep.mubr.bf16.mxu0 0
        %1864 = vmatmul.mubr.bf16.gmra.mrb[0].mxu0 %v1709
        %v1865 = vpop.f32.mrb[0].mxu0
        %v1866 = vadd.f32 %v1725, %v1865
        %v1867 = vpop.f32.mrb[0].mxu0
        %v1868 = vpop.f32.mrb[0].mxu0
        %v1869 = vadd.f32 %v1725, %v1868
        %v1870 = vpop.f32.mrb[0].mxu0
        %1871 = vmatprep.mubr.bf16.mxu0 0
        %1872 = vmatmul.mubr.bf16.gmra.mrb[0].mxu0 %v1710
        %v1873 = vpop.f32.mrb[0].mxu0
        %v1874 = vadd.f32 %v1725, %v1873
        %v1875 = vpop.f32.mrb[0].mxu0
        %v1876 = vpop.f32.mrb[0].mxu0
        %v1877 = vadd.f32 %v1725, %v1876
        %v1878 = vpop.f32.mrb[0].mxu0
        %1879 = vmatprep.mubr.bf16.mxu0 0
        %1880 = vmatmul.mubr.bf16.gmra.mrb[0].mxu0 %v1711
        %v1881 = vpop.f32.mrb[0].mxu0
        %v1882 = vadd.f32 %v1725, %v1881
        %v1883 = vpop.f32.mrb[0].mxu0
        %v1884 = vpop.f32.mrb[0].mxu0
        %v1885 = vadd.f32 %v1725, %v1884
        %v1886 = vpop.f32.mrb[0].mxu0
        %1887 = vdwg.mxu0
        %v1888 = vmax.f32 %v1762, 0.0
        %v1889 = vmax.f32 %v1765, 0.0
        %v1890 = vmax.f32 %v1770, 0.0
        %v1891 = vmax.f32 %v1773, 0.0
        %v1892 = vmax.f32 %v1778, 0.0
        %v1893 = vmax.f32 %v1781, 0.0
        %v1894 = vmax.f32 %v1786, 0.0
        %v1895 = vmax.f32 %v1789, 0.0
        %v1896 = vmax.f32 %v1794, 0.0
        %v1897 = vmax.f32 %v1797, 0.0
        %v1898 = vmax.f32 %v1802, 0.0
        %v1899 = vmax.f32 %v1805, 0.0
        %v1900 = vmax.f32 %v1810, 0.0
        %v1901 = vmax.f32 %v1813, 0.0
        %v1902 = vmax.f32 %v1818, 0.0
        %v1903 = vmax.f32 %v1821, 0.0
        %v1904 = vmax.f32 %v1826, 0.0
        %v1905 = vmax.f32 %v1829, 0.0
        %v1906 = vmax.f32 %v1834, 0.0
        %v1907 = vmax.f32 %v1837, 0.0
        %v1908 = vmax.f32 %v1842, 0.0
        %v1909 = vmax.f32 %v1845, 0.0
        %v1910 = vmax.f32 %v1850, 0.0
        %v1911 = vmax.f32 %v1853, 0.0
        %v1912 = vmax.f32 %v1858, 0.0
        %v1913 = vmax.f32 %v1861, 0.0
        %v1914 = vmax.f32 %v1866, 0.0
        %v1915 = vmax.f32 %v1869, 0.0
        %v1916 = vmax.f32 %v1874, 0.0
        %v1917 = vmax.f32 %v1877, 0.0
        %v1918 = vmax.f32 %v1882, 0.0
        %v1919 = vmax.f32 %v1885, 0.0
        %v1920 = vpack.c.bf16 %v1889, %v1888
        %v1921 = vpack.c.bf16 %v1891, %v1890
        %v1922 = vpack.c.bf16 %v1893, %v1892
        %v1923 = vpack.c.bf16 %v1895, %v1894
        %v1924 = vpack.c.bf16 %v1897, %v1896
        %v1925 = vpack.c.bf16 %v1899, %v1898
        %v1926 = vpack.c.bf16 %v1901, %v1900
        %v1927 = vpack.c.bf16 %v1903, %v1902
        %v1928 = vpack.c.bf16 %v1905, %v1904
        %v1929 = vpack.c.bf16 %v1907, %v1906
        %v1930 = vpack.c.bf16 %v1909, %v1908
        %v1931 = vpack.c.bf16 %v1911, %v1910
        %v1932 = vpack.c.bf16 %v1913, %v1912
        %v1933 = vpack.c.bf16 %v1915, %v1914
        %v1934 = vpack.c.bf16 %v1917, %v1916
        %v1935 = vpack.c.bf16 %v1919, %v1918
        %1936 = vst [vmem:[%s1695] sm:$0xff] %v1920
        %1937 = vst [vmem:[%s1695 + $0x8] sm:$0xff] %v1921
        %1938 = vst [vmem:[%s1695 + $0x10] sm:$0xff] %v1922
        %1939 = vst [vmem:[%s1695 + $0x18] sm:$0xff] %v1923
        %1940 = vst [vmem:[%s1695 + $0x20] sm:$0xff] %v1924
        %1941 = vst [vmem:[%s1695 + $0x28] sm:$0xff] %v1925
        %1942 = vst [vmem:[%s1695 + $0x30] sm:$0xff] %v1926
        %1943 = vst [vmem:[%s1695 + $0x38] sm:$0xff] %v1927
        %1944 = vst [vmem:[%s1695 + $0x40] sm:$0xff] %v1928
        %1945 = vst [vmem:[%s1695 + $0x48] sm:$0xff] %v1929
        %1946 = vst [vmem:[%s1695 + $0x50] sm:$0xff] %v1930
        %1947 = vst [vmem:[%s1695 + $0x58] sm:$0xff] %v1931
        %1948 = vst [vmem:[%s1695 + $0x60] sm:$0xff] %v1932
        %1949 = vst [vmem:[%s1695 + $0x68] sm:$0xff] %v1933
        %1950 = vst [vmem:[%s1695 + $0x70] sm:$0xff] %v1934
        %1951 = vst [vmem:[%s1695 + $0x78] sm:$0xff] %v1935
        %v1952 = vlaneseq
        %v1953 = vshrl.u32 %v1952, 7
        %v1954 = vadd.s32 %v1953, 8
        %v1955 = vadd.s32 %v1953, 16
        %v1956 = vadd.s32 %v1953, 24
        %v1957 = vadd.s32 %v1953, 32
        %v1958 = vadd.s32 %v1953, 40
        %v1959 = vadd.s32 %v1953, 48
        %v1960 = vadd.s32 %v1953, 56
        %v1961 = vadd.s32 %v1953, 64
        %v1962 = vadd.s32 %v1953, 72
        %v1963 = vadd.s32 %v1953, 80
        %v1964 = vadd.s32 %v1953, 88
        %v1965 = vadd.s32 %v1953, 96
        %v1966 = vadd.s32 %v1953, 104
        %v1967 = vadd.s32 %v1953, 112
        %v1968 = vadd.s32 %v1953, 120
        %v1969 = vadd.s32 %v1953, 128
        %v1970 = vadd.s32 %v1953, 136
        %v1971 = vadd.s32 %v1953, 144
        %v1972 = vadd.s32 %v1953, 152
        %v1973 = vadd.s32 %v1953, 160
        %v1974 = vadd.s32 %v1953, 168
        %v1975 = vadd.s32 %v1953, 176
        %v1976 = vadd.s32 %v1953, 184
        %v1977 = vadd.s32 %v1953, 192
        %v1978 = vadd.s32 %v1953, 200
        %v1979 = vadd.s32 %v1953, 208
        %v1980 = vadd.s32 %v1953, 216
        %v1981 = vadd.s32 %v1953, 224
        %v1982 = vadd.s32 %v1953, 232
        %v1983 = vadd.s32 %v1953, 240
        %v1984 = vadd.s32 %v1953, 248
        %v1985 = vstv %s1011
        %v1986 = vadd.s32 %v1985, %v1953
        %v1987 = vadd.s32 %v1985, %v1954
        %v1988 = vadd.s32 %v1985, %v1955
        %v1989 = vadd.s32 %v1985, %v1956
        %v1990 = vadd.s32 %v1985, %v1957
        %v1991 = vadd.s32 %v1985, %v1958
        %v1992 = vadd.s32 %v1985, %v1959
        %v1993 = vadd.s32 %v1985, %v1960
        %v1994 = vadd.s32 %v1985, %v1961
        %v1995 = vadd.s32 %v1985, %v1962
        %v1996 = vadd.s32 %v1985, %v1963
        %v1997 = vadd.s32 %v1985, %v1964
        %v1998 = vadd.s32 %v1985, %v1965
        %v1999 = vadd.s32 %v1985, %v1966
        %v2000 = vadd.s32 %v1985, %v1967
        %v2001 = vadd.s32 %v1985, %v1968
        %v2002 = vadd.s32 %v1985, %v1969
        %v2003 = vadd.s32 %v1985, %v1970
        %v2004 = vadd.s32 %v1985, %v1971
        %v2005 = vadd.s32 %v1985, %v1972
        %v2006 = vadd.s32 %v1985, %v1973
        %v2007 = vadd.s32 %v1985, %v1974
        %v2008 = vadd.s32 %v1985, %v1975
        %v2009 = vadd.s32 %v1985, %v1976
        %v2010 = vadd.s32 %v1985, %v1977
        %v2011 = vadd.s32 %v1985, %v1978
        %v2012 = vadd.s32 %v1985, %v1979
        %v2013 = vadd.s32 %v1985, %v1980
        %v2014 = vadd.s32 %v1985, %v1981
        %v2015 = vadd.s32 %v1985, %v1982
        %v2016 = vadd.s32 %v1985, %v1983
        %v2017 = vadd.s32 %v1985, %v1984
        %vm2018 = vcmp.lt.s32.totalorder %v1986, 600
        %vm2019 = vcmp.lt.s32.totalorder %v1987, 600
        %vm2020 = vcmp.lt.s32.totalorder %v1988, 600
        %vm2021 = vcmp.lt.s32.totalorder %v1989, 600
        %vm2022 = vcmp.lt.s32.totalorder %v1990, 600
        %vm2023 = vcmp.lt.s32.totalorder %v1991, 600
        %vm2024 = vcmp.lt.s32.totalorder %v1992, 600
        %vm2025 = vcmp.lt.s32.totalorder %v1993, 600
        %vm2026 = vcmp.lt.s32.totalorder %v1994, 600
        %vm2027 = vcmp.lt.s32.totalorder %v1995, 600
        %vm2028 = vcmp.lt.s32.totalorder %v1996, 600
        %vm2029 = vcmp.lt.s32.totalorder %v1997, 600
        %vm2030 = vcmp.lt.s32.totalorder %v1998, 600
        %vm2031 = vcmp.lt.s32.totalorder %v1999, 600
        %vm2032 = vcmp.lt.s32.totalorder %v2000, 600
        %vm2033 = vcmp.lt.s32.totalorder %v2001, 600
        %vm2034 = vcmp.lt.s32.totalorder %v2002, 600
        %vm2035 = vcmp.lt.s32.totalorder %v2003, 600
        %vm2036 = vcmp.lt.s32.totalorder %v2004, 600
        %vm2037 = vcmp.lt.s32.totalorder %v2005, 600
        %vm2038 = vcmp.lt.s32.totalorder %v2006, 600
        %vm2039 = vcmp.lt.s32.totalorder %v2007, 600
        %vm2040 = vcmp.lt.s32.totalorder %v2008, 600
        %vm2041 = vcmp.lt.s32.totalorder %v2009, 600
        %vm2042 = vcmp.lt.s32.totalorder %v2010, 600
        %vm2043 = vcmp.lt.s32.totalorder %v2011, 600
        %vm2044 = vcmp.lt.s32.totalorder %v2012, 600
        %vm2045 = vcmp.lt.s32.totalorder %v2013, 600
        %vm2046 = vcmp.lt.s32.totalorder %v2014, 600
        %vm2047 = vcmp.lt.s32.totalorder %v2015, 600
        %vm2048 = vcmp.lt.s32.totalorder %v2016, 600
        %vm2049 = vcmp.lt.s32.totalorder %v2017, 600
        %v2050 = vsel %vm2018, %v1888, 0.0
        %v2051 = vsel %vm2019, %v1889, 0.0
        %v2052 = vsel %vm2020, %v1890, 0.0
        %v2053 = vsel %vm2021, %v1891, 0.0
        %v2054 = vsel %vm2022, %v1892, 0.0
        %v2055 = vsel %vm2023, %v1893, 0.0
        %v2056 = vsel %vm2024, %v1894, 0.0
        %v2057 = vsel %vm2025, %v1895, 0.0
        %v2058 = vsel %vm2026, %v1896, 0.0
        %v2059 = vsel %vm2027, %v1897, 0.0
        %v2060 = vsel %vm2028, %v1898, 0.0
        %v2061 = vsel %vm2029, %v1899, 0.0
        %v2062 = vsel %vm2030, %v1900, 0.0
        %v2063 = vsel %vm2031, %v1901, 0.0
        %v2064 = vsel %vm2032, %v1902, 0.0
        %v2065 = vsel %vm2033, %v1903, 0.0
        %v2066 = vsel %vm2034, %v1904, 0.0
        %v2067 = vsel %vm2035, %v1905, 0.0
        %v2068 = vsel %vm2036, %v1906, 0.0
        %v2069 = vsel %vm2037, %v1907, 0.0
        %v2070 = vsel %vm2038, %v1908, 0.0
        %v2071 = vsel %vm2039, %v1909, 0.0
        %v2072 = vsel %vm2040, %v1910, 0.0
        %v2073 = vsel %vm2041, %v1911, 0.0
        %v2074 = vsel %vm2042, %v1912, 0.0
        %v2075 = vsel %vm2043, %v1913, 0.0
        %v2076 = vsel %vm2044, %v1914, 0.0
        %v2077 = vsel %vm2045, %v1915, 0.0
        %v2078 = vsel %vm2046, %v1916, 0.0
        %v2079 = vsel %vm2047, %v1917, 0.0
        %v2080 = vsel %vm2048, %v1918, 0.0
        %v2081 = vsel %vm2049, %v1919, 0.0
        %v2082 = vld [vmem:[#allocation3] sm:$0x1]
        %v2083 = vadd.f32 %v2050, %v2051
        %v2084 = vadd.f32 %v2083, %v2052
        %v2085 = vadd.f32 %v2084, %v2053
        %v2086 = vadd.f32 %v2085, %v2054
        %v2087 = vadd.f32 %v2086, %v2055
        %v2088 = vadd.f32 %v2087, %v2056
        %v2089 = vadd.f32 %v2088, %v2057
        %v2090 = vadd.f32 %v2089, %v2058
        %v2091 = vadd.f32 %v2090, %v2059
        %v2092 = vadd.f32 %v2091, %v2060
        %v2093 = vadd.f32 %v2092, %v2061
        %v2094 = vadd.f32 %v2093, %v2062
        %v2095 = vadd.f32 %v2094, %v2063
        %v2096 = vadd.f32 %v2095, %v2064
        %v2097 = vadd.f32 %v2096, %v2065
        %v2098 = vadd.f32 %v2097, %v2066
        %v2099 = vadd.f32 %v2098, %v2067
        %v2100 = vadd.f32 %v2099, %v2068
        %v2101 = vadd.f32 %v2100, %v2069
        %v2102 = vadd.f32 %v2101, %v2070
        %v2103 = vadd.f32 %v2102, %v2071
        %v2104 = vadd.f32 %v2103, %v2072
        %v2105 = vadd.f32 %v2104, %v2073
        %v2106 = vadd.f32 %v2105, %v2074
        %v2107 = vadd.f32 %v2106, %v2075
        %v2108 = vadd.f32 %v2107, %v2076
        %v2109 = vadd.f32 %v2108, %v2077
        %v2110 = vadd.f32 %v2109, %v2078
        %v2111 = vadd.f32 %v2110, %v2079
        %v2112 = vadd.f32 %v2111, %v2080
        %v2113 = vadd.f32 %v2112, %v2081
        %v2114 = vrot.slane %v2113, 4
        %v2115 = vadd.f32 %v2113, %v2114
        %v2116 = vrot.slane %v2115, 2
        %v2117 = vadd.f32 %v2115, %v2116
        %v2118 = vrot.slane %v2117, 1
        %v2119 = vadd.f32 %v2117, %v2118
        %v2120 = vadd.f32 %v2082, %v2119
        %2121 = vst [vmem:[#allocation3] sm:$0x1] %v2120
        %v2122 = vld [vmem:[#allocation4] sm:$0x1]
        %v2123 = vmul.f32 %v2050, %v2050
        %v2124 = vmul.f32 %v2051, %v2051
        %v2125 = vmul.f32 %v2052, %v2052
        %v2126 = vmul.f32 %v2053, %v2053
        %v2127 = vmul.f32 %v2054, %v2054
        %v2128 = vmul.f32 %v2055, %v2055
        %v2129 = vmul.f32 %v2056, %v2056
        %v2130 = vmul.f32 %v2057, %v2057
        %v2131 = vmul.f32 %v2058, %v2058
        %v2132 = vmul.f32 %v2059, %v2059
        %v2133 = vmul.f32 %v2060, %v2060
        %v2134 = vmul.f32 %v2061, %v2061
        %v2135 = vmul.f32 %v2062, %v2062
        %v2136 = vmul.f32 %v2063, %v2063
        %v2137 = vmul.f32 %v2064, %v2064
        %v2138 = vmul.f32 %v2065, %v2065
        %v2139 = vmul.f32 %v2066, %v2066
        %v2140 = vmul.f32 %v2067, %v2067
        %v2141 = vmul.f32 %v2068, %v2068
        %v2142 = vmul.f32 %v2069, %v2069
        %v2143 = vmul.f32 %v2070, %v2070
        %v2144 = vmul.f32 %v2071, %v2071
        %v2145 = vmul.f32 %v2072, %v2072
        %v2146 = vmul.f32 %v2073, %v2073
        %v2147 = vmul.f32 %v2074, %v2074
        %v2148 = vmul.f32 %v2075, %v2075
        %v2149 = vmul.f32 %v2076, %v2076
        %v2150 = vmul.f32 %v2077, %v2077
        %v2151 = vmul.f32 %v2078, %v2078
        %v2152 = vmul.f32 %v2079, %v2079
        %v2153 = vmul.f32 %v2080, %v2080
        %v2154 = vmul.f32 %v2081, %v2081
        %v2155 = vadd.f32 %v2123, %v2124
        %v2156 = vadd.f32 %v2155, %v2125
        %v2157 = vadd.f32 %v2156, %v2126
        %v2158 = vadd.f32 %v2157, %v2127
        %v2159 = vadd.f32 %v2158, %v2128
        %v2160 = vadd.f32 %v2159, %v2129
        %v2161 = vadd.f32 %v2160, %v2130
        %v2162 = vadd.f32 %v2161, %v2131
        %v2163 = vadd.f32 %v2162, %v2132
        %v2164 = vadd.f32 %v2163, %v2133
        %v2165 = vadd.f32 %v2164, %v2134
        %v2166 = vadd.f32 %v2165, %v2135
        %v2167 = vadd.f32 %v2166, %v2136
        %v2168 = vadd.f32 %v2167, %v2137
        %v2169 = vadd.f32 %v2168, %v2138
        %v2170 = vadd.f32 %v2169, %v2139
        %v2171 = vadd.f32 %v2170, %v2140
        %v2172 = vadd.f32 %v2171, %v2141
        %v2173 = vadd.f32 %v2172, %v2142
        %v2174 = vadd.f32 %v2173, %v2143
        %v2175 = vadd.f32 %v2174, %v2144
        %v2176 = vadd.f32 %v2175, %v2145
        %v2177 = vadd.f32 %v2176, %v2146
        %v2178 = vadd.f32 %v2177, %v2147
        %v2179 = vadd.f32 %v2178, %v2148
        %v2180 = vadd.f32 %v2179, %v2149
        %v2181 = vadd.f32 %v2180, %v2150
        %v2182 = vadd.f32 %v2181, %v2151
        %v2183 = vadd.f32 %v2182, %v2152
        %v2184 = vadd.f32 %v2183, %v2153
        %v2185 = vadd.f32 %v2184, %v2154
        %v2186 = vrot.slane %v2185, 4
        %v2187 = vadd.f32 %v2185, %v2186
        %v2188 = vrot.slane %v2187, 2
        %v2189 = vadd.f32 %v2187, %v2188
        %v2190 = vrot.slane %v2189, 1
        %v2191 = vadd.f32 %v2189, %v2190
        %v2192 = vadd.f32 %v2122, %v2191
        %2193 = vst [vmem:[#allocation4] sm:$0x1] %v2192
      $region84: #{mlp_forward.1} parent=55 // pred_fallthru
        _
      %p2194 = scmp.eq.s32.totalorder %s24, 2
      // Predicated region
      $region85: #{mlp_forward.1} parent=55 // pred_check
        %p2195 = pneg %p2194
      $region86: #{mlp_forward.1} parent=55 // pred_check_branch
        %2197 = sbr.rel (%p2195) target = $region88
      $region87: #{mlp_forward.1} parent=55 // pred_region
        %s2198 = sshra.s32 %s1011, 4
        %s2199 = sand.u32 %s1011, 15
        %s2200 = smul.addr %s2198, 8
        %s2201 = scalar_lea.vmem [#allocation2], %s2200
        %v2202 = vld [vmem:[%s2201] sm:$0xff]
        %v2203 = vld [vmem:[%s2201 + $0x8] sm:$0xff]
        %v2204 = vld [vmem:[%s2201 + $0x10] sm:$0xff]
        %v2205 = vld [vmem:[%s2201 + $0x18] sm:$0xff]
        %v2206 = vld [vmem:[%s2201 + $0x20] sm:$0xff]
        %v2207 = vld [vmem:[%s2201 + $0x28] sm:$0xff]
        %v2208 = vld [vmem:[%s2201 + $0x30] sm:$0xff]
        %v2209 = vld [vmem:[%s2201 + $0x38] sm:$0xff]
        %v2210 = vld [vmem:[%s2201 + $0x40] sm:$0xff]
        %v2211 = vld [vmem:[%s2201 + $0x48] sm:$0xff]
        %v2212 = vld [vmem:[%s2201 + $0x50] sm:$0xff]
        %v2213 = vld [vmem:[%s2201 + $0x58] sm:$0xff]
        %v2214 = vld [vmem:[%s2201 + $0x60] sm:$0xff]
        %v2215 = vld [vmem:[%s2201 + $0x68] sm:$0xff]
        %v2216 = vld [vmem:[%s2201 + $0x70] sm:$0xff]
        %v2217 = vld [vmem:[%s2201 + $0x78] sm:$0xff]
        %v2218 = vld [vmem:[#allocation7] sm:$0xff]
        %v2219 = vld [vmem:[#allocation7 + $0x8] sm:$0xff]
        %v2220 = vld [vmem:[#allocation7 + $0x10] sm:$0xff]
        %v2221 = vld [vmem:[#allocation7 + $0x18] sm:$0xff]
        %v2222 = vld [vmem:[#allocation7 + $0x20] sm:$0xff]
        %v2223 = vld [vmem:[#allocation7 + $0x28] sm:$0xff]
        %v2224 = vld [vmem:[#allocation7 + $0x30] sm:$0xff]
        %v2225 = vld [vmem:[#allocation7 + $0x38] sm:$0xff]
        %v2226 = vld [vmem:[#allocation8] sm:$0x1]
        %v2228 = vlaneseq
        %v2229 = vshrl.u32 %v2228, 7
        %v2230 = vsub.s32 0, %v2229
        %v2231 = vrot.slane %v2226, %v2230
        %2233 = vmatprep.subr.bf16.mxu0 0
        %2234 = vmatpush1.bf16.msra.mxu0 %v2218
        %2235 = vmatprep.subr.bf16.mxu0 0
        %2236 = vmatpush1.bf16.msra.mxu0 %v2219
        %2237 = vmatprep.subr.bf16.mxu0 0
        %2238 = vmatpush1.bf16.msra.mxu0 %v2220
        %2239 = vmatprep.subr.bf16.mxu0 0
        %2240 = vmatpush1.bf16.msra.mxu0 %v2221
        %2241 = vmatprep.subr.bf16.mxu0 0
        %2242 = vmatpush1.bf16.msra.mxu0 %v2222
        %2243 = vmatprep.subr.bf16.mxu0 0
        %2244 = vmatpush1.bf16.msra.mxu0 %v2223
        %2245 = vmatprep.subr.bf16.mxu0 0
        %2246 = vmatpush1.bf16.msra.mxu0 %v2224
        %2247 = vmatprep.subr.bf16.mxu0 0
        %2248 = vmatpush1.bf16.msra.mxu0 %v2225
        %2249 = vmatprep.subr.bf16.mxu0 0
        %2250 = vmatpush1.bf16.msra.mxu0 0
        %2251 = vmatprep.subr.bf16.mxu0 0
        %2252 = vmatpush1.bf16.msra.mxu0 0
        %2253 = vmatprep.subr.bf16.mxu0 0
        %2254 = vmatpush1.bf16.msra.mxu0 0
        %2255 = vmatprep.subr.bf16.mxu0 0
        %2256 = vmatpush1.bf16.msra.mxu0 0
        %2257 = vmatprep.subr.bf16.mxu0 0
        %2258 = vmatpush1.bf16.msra.mxu0 0
        %2259 = vmatprep.subr.bf16.mxu0 0
        %2260 = vmatpush1.bf16.msra.mxu0 0
        %2261 = vmatprep.subr.bf16.mxu0 0
        %2262 = vmatpush1.bf16.msra.mxu0 0
        %2263 = vmatprep.subr.bf16.mxu0 0
        %2264 = vmatpush1.bf16.msra.mxu0 0
        %2265 = vmatprep.mubr.bf16.mxu0 0
        %2266 = vmatmul.mubr.bf16.gmra.mrb[0].mxu0 %v2202
        %v2267 = vpop.f32.mrb[0].mxu0
        %v2268 = vadd.f32 %v2231, %v2267
        %v2269 = vpop.f32.mrb[0].mxu0
        %v2270 = vpop.f32.mrb[0].mxu0
        %v2271 = vadd.f32 %v2231, %v2270
        %v2272 = vpop.f32.mrb[0].mxu0
        %2273 = vmatprep.mubr.bf16.mxu0 0
        %2274 = vmatmul.mubr.bf16.gmra.mrb[0].mxu0 %v2203
        %v2275 = vpop.f32.mrb[0].mxu0
        %v2276 = vadd.f32 %v2231, %v2275
        %v2277 = vpop.f32.mrb[0].mxu0
        %v2278 = vpop.f32.mrb[0].mxu0
        %v2279 = vadd.f32 %v2231, %v2278
        %v2280 = vpop.f32.mrb[0].mxu0
        %2281 = vmatprep.mubr.bf16.mxu0 0
        %2282 = vmatmul.mubr.bf16.gmra.mrb[0].mxu0 %v2204
        %v2283 = vpop.f32.mrb[0].mxu0
        %v2284 = vadd.f32 %v2231, %v2283
        %v2285 = vpop.f32.mrb[0].mxu0
        %v2286 = vpop.f32.mrb[0].mxu0
        %v2287 = vadd.f32 %v2231, %v2286
        %v2288 = vpop.f32.mrb[0].mxu0
        %2289 = vmatprep.mubr.bf16.mxu0 0
        %2290 = vmatmul.mubr.bf16.gmra.mrb[0].mxu0 %v2205
        %v2291 = vpop.f32.mrb[0].mxu0
        %v2292 = vadd.f32 %v2231, %v2291
        %v2293 = vpop.f32.mrb[0].mxu0
        %v2294 = vpop.f32.mrb[0].mxu0
        %v2295 = vadd.f32 %v2231, %v2294
        %v2296 = vpop.f32.mrb[0].mxu0
        %2297 = vmatprep.mubr.bf16.mxu0 0
        %2298 = vmatmul.mubr.bf16.gmra.mrb[0].mxu0 %v2206
        %v2299 = vpop.f32.mrb[0].mxu0
        %v2300 = vadd.f32 %v2231, %v2299
        %v2301 = vpop.f32.mrb[0].mxu0
        %v2302 = vpop.f32.mrb[0].mxu0
        %v2303 = vadd.f32 %v2231, %v2302
        %v2304 = vpop.f32.mrb[0].mxu0
        %2305 = vmatprep.mubr.bf16.mxu0 0
        %2306 = vmatmul.mubr.bf16.gmra.mrb[0].mxu0 %v2207
        %v2307 = vpop.f32.mrb[0].mxu0
        %v2308 = vadd.f32 %v2231, %v2307
        %v2309 = vpop.f32.mrb[0].mxu0
        %v2310 = vpop.f32.mrb[0].mxu0
        %v2311 = vadd.f32 %v2231, %v2310
        %v2312 = vpop.f32.mrb[0].mxu0
        %2313 = vmatprep.mubr.bf16.mxu0 0
        %2314 = vmatmul.mubr.bf16.gmra.mrb[0].mxu0 %v2208
        %v2315 = vpop.f32.mrb[0].mxu0
        %v2316 = vadd.f32 %v2231, %v2315
        %v2317 = vpop.f32.mrb[0].mxu0
        %v2318 = vpop.f32.mrb[0].mxu0
        %v2319 = vadd.f32 %v2231, %v2318
        %v2320 = vpop.f32.mrb[0].mxu0
        %2321 = vmatprep.mubr.bf16.mxu0 0
        %2322 = vmatmul.mubr.bf16.gmra.mrb[0].mxu0 %v2209
        %v2323 = vpop.f32.mrb[0].mxu0
        %v2324 = vadd.f32 %v2231, %v2323
        %v2325 = vpop.f32.mrb[0].mxu0
        %v2326 = vpop.f32.mrb[0].mxu0
        %v2327 = vadd.f32 %v2231, %v2326
        %v2328 = vpop.f32.mrb[0].mxu0
        %2329 = vmatprep.mubr.bf16.mxu0 0
        %2330 = vmatmul.mubr.bf16.gmra.mrb[0].mxu0 %v2210
        %v2331 = vpop.f32.mrb[0].mxu0
        %v2332 = vadd.f32 %v2231, %v2331
        %v2333 = vpop.f32.mrb[0].mxu0
        %v2334 = vpop.f32.mrb[0].mxu0
        %v2335 = vadd.f32 %v2231, %v2334
        %v2336 = vpop.f32.mrb[0].mxu0
        %2337 = vmatprep.mubr.bf16.mxu0 0
        %2338 = vmatmul.mubr.bf16.gmra.mrb[0].mxu0 %v2211
        %v2339 = vpop.f32.mrb[0].mxu0
        %v2340 = vadd.f32 %v2231, %v2339
        %v2341 = vpop.f32.mrb[0].mxu0
        %v2342 = vpop.f32.mrb[0].mxu0
        %v2343 = vadd.f32 %v2231, %v2342
        %v2344 = vpop.f32.mrb[0].mxu0
        %2345 = vmatprep.mubr.bf16.mxu0 0
        %2346 = vmatmul.mubr.bf16.gmra.mrb[0].mxu0 %v2212
        %v2347 = vpop.f32.mrb[0].mxu0
        %v2348 = vadd.f32 %v2231, %v2347
        %v2349 = vpop.f32.mrb[0].mxu0
        %v2350 = vpop.f32.mrb[0].mxu0
        %v2351 = vadd.f32 %v2231, %v2350
        %v2352 = vpop.f32.mrb[0].mxu0
        %2353 = vmatprep.mubr.bf16.mxu0 0
        %2354 = vmatmul.mubr.bf16.gmra.mrb[0].mxu0 %v2213
        %v2355 = vpop.f32.mrb[0].mxu0
        %v2356 = vadd.f32 %v2231, %v2355
        %v2357 = vpop.f32.mrb[0].mxu0
        %v2358 = vpop.f32.mrb[0].mxu0
        %v2359 = vadd.f32 %v2231, %v2358
        %v2360 = vpop.f32.mrb[0].mxu0
        %2361 = vmatprep.mubr.bf16.mxu0 0
        %2362 = vmatmul.mubr.bf16.gmra.mrb[0].mxu0 %v2214
        %v2363 = vpop.f32.mrb[0].mxu0
        %v2364 = vadd.f32 %v2231, %v2363
        %v2365 = vpop.f32.mrb[0].mxu0
        %v2366 = vpop.f32.mrb[0].mxu0
        %v2367 = vadd.f32 %v2231, %v2366
        %v2368 = vpop.f32.mrb[0].mxu0
        %2369 = vmatprep.mubr.bf16.mxu0 0
        %2370 = vmatmul.mubr.bf16.gmra.mrb[0].mxu0 %v2215
        %v2371 = vpop.f32.mrb[0].mxu0
        %v2372 = vadd.f32 %v2231, %v2371
        %v2373 = vpop.f32.mrb[0].mxu0
        %v2374 = vpop.f32.mrb[0].mxu0
        %v2375 = vadd.f32 %v2231, %v2374
        %v2376 = vpop.f32.mrb[0].mxu0
        %2377 = vmatprep.mubr.bf16.mxu0 0
        %2378 = vmatmul.mubr.bf16.gmra.mrb[0].mxu0 %v2216
        %v2379 = vpop.f32.mrb[0].mxu0
        %v2380 = vadd.f32 %v2231, %v2379
        %v2381 = vpop.f32.mrb[0].mxu0
        %v2382 = vpop.f32.mrb[0].mxu0
        %v2383 = vadd.f32 %v2231, %v2382
        %v2384 = vpop.f32.mrb[0].mxu0
        %2385 = vmatprep.mubr.bf16.mxu0 0
        %2386 = vmatmul.mubr.bf16.gmra.mrb[0].mxu0 %v2217
        %v2387 = vpop.f32.mrb[0].mxu0
        %v2388 = vadd.f32 %v2231, %v2387
        %v2389 = vpop.f32.mrb[0].mxu0
        %v2390 = vpop.f32.mrb[0].mxu0
        %v2391 = vadd.f32 %v2231, %v2390
        %v2392 = vpop.f32.mrb[0].mxu0
        %2393 = vdwg.mxu0
        %2394 = vst [vmem:[%s368] sm:$0xff] %v2268
        %2395 = vst [vmem:[%s368 + $0x8] sm:$0xff] %v2271
        %2396 = vst [vmem:[%s368 + $0x10] sm:$0xff] %v2276
        %2397 = vst [vmem:[%s368 + $0x18] sm:$0xff] %v2279
        %2398 = vst [vmem:[%s368 + $0x20] sm:$0xff] %v2284
        %2399 = vst [vmem:[%s368 + $0x28] sm:$0xff] %v2287
        %2400 = vst [vmem:[%s368 + $0x30] sm:$0xff] %v2292
        %2401 = vst [vmem:[%s368 + $0x38] sm:$0xff] %v2295
        %2402 = vst [vmem:[%s368 + $0x40] sm:$0xff] %v2300
        %2403 = vst [vmem:[%s368 + $0x48] sm:$0xff] %v2303
        %2404 = vst [vmem:[%s368 + $0x50] sm:$0xff] %v2308
        %2405 = vst [vmem:[%s368 + $0x58] sm:$0xff] %v2311
        %2406 = vst [vmem:[%s368 + $0x60] sm:$0xff] %v2316
        %2407 = vst [vmem:[%s368 + $0x68] sm:$0xff] %v2319
        %2408 = vst [vmem:[%s368 + $0x70] sm:$0xff] %v2324
        %2409 = vst [vmem:[%s368 + $0x78] sm:$0xff] %v2327
        %2410 = vst [vmem:[%s368 + $0x80] sm:$0xff] %v2332
        %2411 = vst [vmem:[%s368 + $0x88] sm:$0xff] %v2335
        %2412 = vst [vmem:[%s368 + $0x90] sm:$0xff] %v2340
        %2413 = vst [vmem:[%s368 + $0x98] sm:$0xff] %v2343
        %2414 = vst [vmem:[%s368 + $0xa0] sm:$0xff] %v2348
        %2415 = vst [vmem:[%s368 + $0xa8] sm:$0xff] %v2351
        %2416 = vst [vmem:[%s368 + $0xb0] sm:$0xff] %v2356
        %2417 = vst [vmem:[%s368 + $0xb8] sm:$0xff] %v2359
        %2418 = vst [vmem:[%s368 + $0xc0] sm:$0xff] %v2364
        %2419 = vst [vmem:[%s368 + $0xc8] sm:$0xff] %v2367
        %2420 = vst [vmem:[%s368 + $0xd0] sm:$0xff] %v2372
        %2421 = vst [vmem:[%s368 + $0xd8] sm:$0xff] %v2375
        %2422 = vst [vmem:[%s368 + $0xe0] sm:$0xff] %v2380
        %2423 = vst [vmem:[%s368 + $0xe8] sm:$0xff] %v2383
        %2424 = vst [vmem:[%s368 + $0xf0] sm:$0xff] %v2388
        %2425 = vst [vmem:[%s368 + $0xf8] sm:$0xff] %v2391
      $region88: #{mlp_forward.1} parent=55 // pred_fallthru
        _
      %p2426 = scmp.eq.s32.totalorder %s24, 2
      %s2427 = scalar_select %p2426, %s25, 0
      %s2428 = smul.u32 32, %s2427
      %p2429 = scmp.lt.s32.totalorder %s2428, 95
      %s2430 = scalar_select %p2429, %s2428, 95
      %s2431 = smul.addr %s2430, 8
      %s2432 = scalar_lea.vmem %s9, %s2431
      // Predicated region
      $region89: #{mlp_forward.1} parent=55 // pred_check
        %p2433 = pneg %p252
      $region90: #{mlp_forward.1} parent=55 // pred_check_branch
        %2435 = sbr.rel (%p2433) target = $region92
      $region91: #{mlp_forward.1} parent=55 // pred_region
        %p2436 = scmp.eq.s32.totalorder %s24, 2
        %s2437 = scalar_select %p2436, %s25, 0
        %s2438 = smul.u32 32, %s2437
      $region92: #{mlp_forward.1} parent=55 // pred_fallthru
        _
    $region56: #{mlp_forward.1} parent=5 // pred_fallthru
      _
    %p2439 = scmp.le.s32.totalorder 2, %s15
    // Predicated region
    $region93: #{mlp_forward.1} parent=5 // pred_check
      %p2440 = pneg %p2439
    $region94: #{mlp_forward.1} parent=5 // pred_check_branch
      %2442 = sbr.rel (%p2440) target = $region96
    $region95: #{mlp_forward.1} parent=5 // pred_region
      %s2443 = ssub.s32 %s15, 2
      // Predicated region
      $region97: #{mlp_forward.1} parent=95 // pred_check
        %p2444 = pneg %p258
      $region98: #{mlp_forward.1} parent=95 // pred_check_branch
        %2446 = sbr.rel (%p2444) target = $region100
      $region99: #{mlp_forward.1} parent=95 // pred_region
        %p2447 = scmp.eq.s32.totalorder %s26, 2
        %s2448 = scalar_select %p2447, %s27, 0
        %s2449 = smul.u32 32, %s2448
        %p2450 = scmp.lt.s32.totalorder %s2449, 95
        %s2451 = scalar_select %p2450, %s2449, 95
        %s2452 = smul.addr %s2451, 8
        %s2453 = scalar_lea.vmem %s9, %s2452
      $region100: #{mlp_forward.1} parent=95 // pred_fallthru
        _
    $region96: #{mlp_forward.1} parent=5 // pred_fallthru
      _
  $region6: #{mlp_forward.1} parent=0 // loop_footer
    %s19 = sadd.s32 1, %s15
  $region7: #{mlp_forward.1} parent=0 // loop_footer_branch
    %14 = sbr.rel target = $region3
  $region8: #{mlp_forward.1} parent=0 // loop_exit
    _

</llo_original>
